<compile_context>
chip_gen: v7x
topology: tpu7x:2x2x1
jax: 0.10.0
libtpu: 0.0.40
codegen_flags: <defaults>
</compile_context>

<pallas_src>
import math

import jax
import jax.numpy as jnp
from jax.experimental import pallas as pl
from jax.experimental.pallas import tpu as pltpu

BN_EPS = 1e-5
TM_CAP = 256          # max rows per A/out tile
K_ALIGN = 512         # weights pre-padded so TK in {512, 1024} always divides Kp


def _round_up(x, m):
    return (x + m - 1) // m * m


# ---------------------------------------------------------------------------
# Pallas kernels
# ---------------------------------------------------------------------------
def _make_matmul_kernel(has_res, relu):
    """Tiled bf16 matmul (f32 acc) with fused BN scale/shift (+res) (+ReLU)."""
    def kernel(*refs):
        if has_res:
            a_ref, b_ref, scale_ref, shift_ref, res_ref, o_ref, acc_ref = refs
        else:
            a_ref, b_ref, scale_ref, shift_ref, o_ref, acc_ref = refs
            res_ref = None
        k = pl.program_id(2)

        @pl.when(k == 0)
        def _():
            acc_ref[...] = jnp.zeros_like(acc_ref)

        acc_ref[...] += jnp.dot(a_ref[...], b_ref[...],
                                preferred_element_type=jnp.float32)

        @pl.when(k == pl.num_programs(2) - 1)
        def _():
            out = acc_ref[...] * scale_ref[...] + shift_ref[...]
            if has_res:
                out = out + res_ref[...].astype(jnp.float32)
            if relu:
                out = jnp.maximum(out, 0.0)
            o_ref[...] = out.astype(o_ref.dtype)

    return kernel


def _max_kernel(x_ref, o_ref):
    o_ref[...] = jnp.max(x_ref[...], axis=0)


def _avg_kernel(x_ref, o_ref):
    s = x_ref.shape[1]
    o_ref[...] = (jnp.sum(x_ref[...].astype(jnp.float32), axis=1)
                  * (1.0 / s)).astype(o_ref.dtype)


# ---------------------------------------------------------------------------
# Matmul wrapper (weights / BN already prepped + padded at init time)
# ---------------------------------------------------------------------------
def matmul_bn(a, cp, residual=None, relu=True):
    """out = maybe_relu((a @ W) * scale + shift [+ residual]); a is (M, K) bf16."""
    M, K = a.shape
    Kp, Np, Nout = cp['Kp'], cp['Np'], cp['cout']

    TM = min(_round_up(M, 8), TM_CAP)
    Mp = _round_up(M, TM)
    TK = 1024 if (Kp >= 1024 and Kp % 1024 == 0) else K_ALIGN
    TN = Np if Np <= 128 else Np // 2      # >=2 N tiles when Cout >= 256 (megacore)

    a_p = a.astype(jnp.bfloat16)
    if (Mp, Kp) != (M, K):
        a_p = jnp.pad(a_p, ((0, Mp - M), (0, Kp - K)))

    in_specs = [
        pl.BlockSpec((TM, TK), lambda i, j, k: (i, k)),
        pl.BlockSpec((TK, TN), lambda i, j, k: (k, j)),
        pl.BlockSpec((1, TN), lambda i, j, k: (0, j)),
        pl.BlockSpec((1, TN), lambda i, j, k: (0, j)),
    ]
    inputs = [a_p, cp['w'], cp['scale'], cp['shift']]

    has_res = residual is not None
    if has_res:
        r_p = residual.astype(jnp.bfloat16)
        if r_p.shape != (Mp, Np):
            r_p = jnp.pad(r_p, ((0, Mp - M), (0, Np - Nout)))
        in_specs.append(pl.BlockSpec((TM, TN), lambda i, j, k: (i, j)))
        inputs.append(r_p)

    bytes_accessed = 2 * (Mp * Kp + Kp * Np + Mp * Np) + 8 * Np
    if has_res:
        bytes_accessed += 2 * Mp * Np
    cost = pl.CostEstimate(flops=2 * M * Nout * K,
                           transcendentals=0,
                           bytes_accessed=bytes_accessed)

    out = pl.pallas_call(
        _make_matmul_kernel(has_res, relu),
        out_shape=jax.ShapeDtypeStruct((Mp, Np), jnp.bfloat16),
        grid_spec=pltpu.PrefetchScalarGridSpec(
            num_scalar_prefetch=0,
            grid=(Mp // TM, Np // TN, Kp // TK),
            in_specs=in_specs,
            out_specs=pl.BlockSpec((TM, TN), lambda i, j, k: (i, j)),
            scratch_shapes=[pltpu.VMEM((TM, TN), jnp.float32)],
        ),
        compiler_params=pltpu.CompilerParams(
            dimension_semantics=("parallel", "parallel", "arbitrary")),
        cost_estimate=cost,
    )(*inputs)
    return out[:M, :Nout]


# ---------------------------------------------------------------------------
# Conv3d / pooling built on the kernels
# ---------------------------------------------------------------------------
def _im2col(x, ksize, stride, padding, pad_value=0.0):
    """x: (N,D,H,W,C) -> patches (N,Do,Ho,Wo,KKK,C) and output spatial dims."""
    N, D, H, W, C = x.shape
    kd, kh, kw = ksize
    sd, sh, sw = stride
    pd, ph, pw = padding
    xp = jnp.pad(x, ((0, 0), (pd, pd), (ph, ph), (pw, pw), (0, 0)),
                 constant_values=pad_value)
    Do = (D + 2 * pd - kd) // sd + 1
    Ho = (H + 2 * ph - kh) // sh + 1
    Wo = (W + 2 * pw - kw) // sw + 1
    slices = []
    for a in range(kd):
        for b in range(kh):
            for c in range(kw):
                slices.append(xp[:, a:a + sd * Do:sd,
                                 b:b + sh * Ho:sh,
                                 c:c + sw * Wo:sw, :])
    patches = jnp.stack(slices, axis=-2)
    return patches, (Do, Ho, Wo)


def conv3d_bn(x, cp, stride, padding, relu=True, residual=None):
    """Conv3d (bias=False) + eval-mode BatchNorm3d [+ residual add] [+ ReLU]."""
    N = x.shape[0]
    kd, kh, kw = cp['ksize']
    patches, (Do, Ho, Wo) = _im2col(x, (kd, kh, kw), stride, padding)
    M = N * Do * Ho * Wo
    a = patches.reshape(M, cp['K'])
    res2d = residual.reshape(M, cp['cout']) if residual is not None else None
    out = matmul_bn(a, cp, res2d, relu)
    return out.reshape(N, Do, Ho, Wo, cp['cout'])


def maxpool3d(x, k=3, s=2, p=1):
    """MaxPool3d(kernel=3, stride=2, padding=1), -inf padding (PyTorch semantics)."""
    N, D, H, W, C = x.shape
    xp = jnp.pad(x, ((0, 0), (p, p), (p, p), (p, p), (0, 0)),
                 constant_values=-jnp.inf)
    Do = (D + 2 * p - k) // s + 1
    Ho = (H + 2 * p - k) // s + 1
    Wo = (W + 2 * p - k) // s + 1
    slices = []
    for a in range(k):
        for b in range(k):
            for c in range(k):
                slices.append(xp[:, a:a + s * Do:s, b:b + s * Ho:s, c:c + s * Wo:s, :])
    KKK = k * k * k
    M = N * Do * Ho * Wo
    MC = M * C
    # lane-dense layout: elementwise max over taps on (rows, 128) tiles
    if MC <= 256 * 128:
        MCp = _round_up(MC, 8 * 128)
        TR = MCp // 128
    else:
        MCp = _round_up(MC, 256 * 128)
        TR = 256
    R = MCp // 128
    flat = jnp.stack(slices, axis=0).reshape(KKK, MC)
    if MCp != MC:
        flat = jnp.pad(flat, ((0, 0), (0, MCp - MC)), constant_values=-jnp.inf)
    flat = flat.reshape(KKK, R, 128)
    out = pl.pallas_call(
        _max_kernel,
        out_shape=jax.ShapeDtypeStruct((R, 128), x.dtype),
        grid=(R // TR,),
        in_specs=[pl.BlockSpec((KKK, TR, 128), lambda i: (0, i, 0))],
        out_specs=pl.BlockSpec((TR, 128), lambda i: (i, 0)),
    )(flat)
    out = out.reshape(MCp)[:MC]
    return out.reshape(N, Do, Ho, Wo, C)


def global_avgpool(x):
    """AvgPool3d with kernel == feature-map size (global average) + flatten."""
    N, D, H, W, C = x.shape
    S = D * H * W
    xt = x.reshape(N, S, C)
    return pl.pallas_call(
        _avg_kernel,
        out_shape=jax.ShapeDtypeStruct((N, C), jnp.float32),
        in_specs=[pl.BlockSpec((N, S, C), lambda: (0, 0, 0))],
        out_specs=pl.BlockSpec((N, C), lambda: (0, 0)),
    )(xt)


# ---------------------------------------------------------------------------
# Parameters (deterministic kaiming_normal fan_out; BN folded & padded ONCE)
# ---------------------------------------------------------------------------
def _prep_conv(key, ksize, cin, cout):
    kd, kh, kw = ksize
    K = kd * kh * kw * cin
    fan_out = cout * kd * kh * kw
    std = math.sqrt(2.0 / fan_out)
    w = jax.random.normal(key, (kd, kh, kw, cin, cout), jnp.float32) * std
    # eval-mode BN fold: gamma=1, beta=0, mean=0, var=1
    gamma = jnp.ones((cout,), jnp.float32)
    beta = jnp.zeros((cout,), jnp.float32)
    mean = jnp.zeros((cout,), jnp.float32)
    var = jnp.ones((cout,), jnp.float32)
    scale = gamma / jnp.sqrt(var + BN_EPS)
    shift = beta - mean * scale
    Kp = _round_up(K, K_ALIGN)
    Np = _round_up(cout, 128)
    wmat = jnp.pad(w.reshape(K, cout),
                   ((0, Kp - K), (0, Np - cout))).astype(jnp.bfloat16)
    scale_p = jnp.pad(scale.reshape(1, cout), ((0, 0), (0, Np - cout)))
    shift_p = jnp.pad(shift.reshape(1, cout), ((0, 0), (0, Np - cout)))
    return dict(w=wmat, scale=scale_p, shift=shift_p,
                ksize=ksize, cin=cin, cout=cout, K=K, Kp=Kp, Np=Np)


def init_resnet_params(key, layers=(1, 1, 1, 1)):
    params = {}
    key, k = jax.random.split(key)
    params['conv1'] = _prep_conv(k, (7, 7, 7), 2, 64)
    inplanes = 64
    for li, (planes, nblocks, stride) in enumerate(
            zip((64, 128, 256, 512), layers, (1, 2, 2, 2))):
        blocks = []
        for bi in range(nblocks):
            s = stride if bi == 0 else 1
            key, k1, k2 = jax.random.split(key, 3)
            bp = {'stride': s,
                  'conv1': _prep_conv(k1, (3, 3, 3), inplanes, planes),
                  'conv2': _prep_conv(k2, (3, 3, 3), planes, planes)}
            if s != 1 or inplanes != planes:  # shortcut type 'B'
                key, kd = jax.random.split(key)
                bp['down'] = _prep_conv(kd, (1, 1, 1), inplanes, planes)
            blocks.append(bp)
            inplanes = planes
        params[f'layer{li + 1}'] = blocks
    return params


# ---------------------------------------------------------------------------
# Forward
# ---------------------------------------------------------------------------
def basic_block(x, bp):
    s = bp['stride']
    identity = x
    out = conv3d_bn(x, bp['conv1'], stride=(s, s, s), padding=(1, 1, 1), relu=True)
    if 'down' in bp:
        identity = conv3d_bn(x, bp['down'], stride=(s, s, s), padding=(0, 0, 0),
                             relu=False)
    out = conv3d_bn(out, bp['conv2'], stride=(1, 1, 1), padding=(1, 1, 1), relu=True,
                    residual=identity)
    return out


def resnet_forward(params, x_ncdhw, sample_size, sample_duration):
    # NCDHW -> NDHWC, bf16 activations throughout
    x = jnp.transpose(x_ncdhw, (0, 2, 3, 4, 1)).astype(jnp.bfloat16)
    x = conv3d_bn(x, params['conv1'], stride=(1, 2, 2), padding=(3, 3, 3), relu=True)
    x = maxpool3d(x, k=3, s=2, p=1)
    for li in range(1, 5):
        for bp in params[f'layer{li}']:
            x = basic_block(x, bp)
    last_duration = int(math.ceil(sample_duration / 16))
    last_size = int(math.ceil(sample_size / 32))
    # TODO(synk): general sliding-window AvgPool3d not implemented; for this
    # architecture the final feature map equals the pool kernel, so it is exactly
    # a global average followed by x.view(N, -1).
    assert x.shape[1:4] == (last_duration, last_size, last_size)
    return global_avgpool(x)  # (N, 512) float32


if __name__ == "__main__":
    key = jax.random.PRNGKey(0)
    pkey, xkey = jax.random.split(key)
    sample_duration, sample_size = 8, 16
    params = init_resnet_params(pkey, layers=(1, 1, 1, 1))
    # PyTorch input layout NCDHW: (batch=2, channels=2, D=8, H=16, W=16)
    x = jax.random.normal(xkey, (2, 2, sample_duration, sample_size, sample_size),
                          jnp.float32)
    out = resnet_forward(params, x, sample_size, sample_duration)
    out = jax.block_until_ready(out)
    assert out.shape == (2, 512), out.shape
    assert bool(jnp.all(jnp.isfinite(out)))
    print("KERNEL_OK")
</pallas_src>

<mosaic_0001>
module attributes {stable_mosaic.version = 11 : i64} {
  func.func @kernel(%arg0: i32, %arg1: i32, %arg2: i32, %arg3: memref<256x1024xbf16, #tpu.memory_space<vmem>>, %arg4: memref<1024x128xbf16, #tpu.memory_space<vmem>>, %arg5: memref<1x128xf32, #tpu.memory_space<vmem>>, %arg6: memref<1x128xf32, #tpu.memory_space<vmem>>, %arg7: memref<256x128xbf16, #tpu.memory_space<vmem>>, %arg8: memref<256x128xf32, #tpu.memory_space<vmem>>) attributes {dimension_semantics = [#tpu.dimension_semantics<parallel>, #tpu.dimension_semantics<parallel>, #tpu.dimension_semantics<arbitrary>], iteration_bounds = array<i64: 4, 1, 1>, scalar_prefetch = 0 : i64, scratch_operands = 1 : i64, tpu.core_type = #tpu.core_type<tc>, window_params = [{transform_indices = @transform_0, window_bounds = array<i64: 256, 1024>}, {transform_indices = @transform_1, window_bounds = array<i64: 1024, 128>}, {transform_indices = @transform_2, window_bounds = array<i64: 1, 128>}, {transform_indices = @transform_3, window_bounds = array<i64: 1, 128>}, {transform_indices = @transform_4, window_bounds = array<i64: 256, 128>}]} {
    %c0_i32 = arith.constant 0 : i32
    %0 = arith.cmpi eq, %arg2, %c0_i32 : i32
    %1 = arith.extui %0 : i1 to i32
    %c0_i32_0 = arith.constant 0 : i32
    %2 = arith.cmpi ne, %1, %c0_i32_0 : i32
    scf.if %2 {
      %cst_10 = arith.constant 0.000000e+00 : f32
      %12 = vector.broadcast %cst_10 : f32 to vector<256x128xf32>
      %c0_11 = arith.constant 0 : index
      %c0_12 = arith.constant 0 : index
      %13 = vector.load %arg8[%c0_11, %c0_12] : memref<256x128xf32, #tpu.memory_space<vmem>>, vector<256x128xf32>
      tpu.vector_store %arg8[%c0_11, %c0_12], %12 {strides = array<i32>} : memref<256x128xf32, #tpu.memory_space<vmem>>, vector<256x128xf32>,
    } else {
    }
    %c0 = arith.constant 0 : index
    %c0_1 = arith.constant 0 : index
    %3 = vector.load %arg8[%c0, %c0_1] : memref<256x128xf32, #tpu.memory_space<vmem>>, vector<256x128xf32>
    %c0_2 = arith.constant 0 : index
    %c0_3 = arith.constant 0 : index
    %4 = vector.load %arg3[%c0_2, %c0_3] : memref<256x1024xbf16, #tpu.memory_space<vmem>>, vector<256x1024xbf16>
    %c0_4 = arith.constant 0 : index
    %c0_5 = arith.constant 0 : index
    %5 = vector.load %arg4[%c0_4, %c0_5] : memref<1024x128xbf16, #tpu.memory_space<vmem>>, vector<1024x128xbf16>
    %cst = arith.constant dense<0.000000e+00> : vector<256x128xf32>
    %6 = tpu.matmul %4, %5, %cst {dimension_numbers = #tpu.dot_dimension_numbers<[1], [0], [0], [1], [0, 0, 1, 1], [], []>} : vector<256x1024xbf16>, vector<1024x128xbf16>, vector<256x128xf32> -> vector<256x128xf32>
    %7 = arith.addf %3, %6 : vector<256x128xf32>
    %c0_6 = arith.constant 0 : index
    %c0_7 = arith.constant 0 : index
    %8 = vector.load %arg8[%c0_6, %c0_7] : memref<256x128xf32, #tpu.memory_space<vmem>>, vector<256x128xf32>
    tpu.vector_store %arg8[%c0_6, %c0_7], %7 {strides = array<i32>} : memref<256x128xf32, #tpu.memory_space<vmem>>, vector<256x128xf32>,
    %c0_i32_8 = arith.constant 0 : i32
    %9 = arith.cmpi eq, %arg2, %c0_i32_8 : i32
    %10 = arith.extui %9 : i1 to i32
    %c0_i32_9 = arith.constant 0 : i32
    %11 = arith.cmpi ne, %10, %c0_i32_9 : i32
    scf.if %11 {
      %c0_10 = arith.constant 0 : index
      %c0_11 = arith.constant 0 : index
      %12 = vector.load %arg8[%c0_10, %c0_11] : memref<256x128xf32, #tpu.memory_space<vmem>>, vector<256x128xf32>
      %c0_12 = arith.constant 0 : index
      %c0_13 = arith.constant 0 : index
      %13 = vector.load %arg5[%c0_12, %c0_13] : memref<1x128xf32, #tpu.memory_space<vmem>>, vector<1x128xf32>
      %14 = vector.broadcast %13 : vector<1x128xf32> to vector<256x128xf32>
      %15 = arith.mulf %12, %14 : vector<256x128xf32>
      %c0_14 = arith.constant 0 : index
      %c0_15 = arith.constant 0 : index
      %16 = vector.load %arg6[%c0_14, %c0_15] : memref<1x128xf32, #tpu.memory_space<vmem>>, vector<1x128xf32>
      %17 = vector.broadcast %16 : vector<1x128xf32> to vector<256x128xf32>
      %18 = arith.addf %15, %17 : vector<256x128xf32>
      %cst_16 = arith.constant 0.000000e+00 : f32
      %19 = vector.broadcast %cst_16 : f32 to vector<256x128xf32>
      %20 = arith.maximumf %18, %19 : vector<256x128xf32>
      %21 = arith.truncf %20 : vector<256x128xf32> to vector<256x128xbf16>
      %c0_17 = arith.constant 0 : index
      %c0_18 = arith.constant 0 : index
      %22 = vector.load %arg7[%c0_17, %c0_18] : memref<256x128xbf16, #tpu.memory_space<vmem>>, vector<256x128xbf16>
      tpu.vector_store %arg7[%c0_17, %c0_18], %21 {strides = array<i32>} : memref<256x128xbf16, #tpu.memory_space<vmem>>, vector<256x128xbf16>,
    } else {
    }
    return
  }
  func.func @transform_0(%arg0: i32, %arg1: i32, %arg2: i32) -> (i32, i32) {
    %c0_i32 = arith.constant 0 : i32
    return %arg0, %arg2 : i32, i32
  }
  func.func @transform_1(%arg0: i32, %arg1: i32, %arg2: i32) -> (i32, i32) {
    %c0_i32 = arith.constant 0 : i32
    return %arg2, %arg1 : i32, i32
  }
  func.func @transform_2(%arg0: i32, %arg1: i32, %arg2: i32) -> (i32, i32) {
    %c0_i32 = arith.constant 0 : i32
    %c0_i32_0 = arith.constant 0 : i32
    return %c0_i32, %arg1 : i32, i32
  }
  func.func @transform_3(%arg0: i32, %arg1: i32, %arg2: i32) -> (i32, i32) {
    %c0_i32 = arith.constant 0 : i32
    %c0_i32_0 = arith.constant 0 : i32
    return %c0_i32, %arg1 : i32, i32
  }
  func.func @transform_4(%arg0: i32, %arg1: i32, %arg2: i32) -> (i32, i32) {
    %c0_i32 = arith.constant 0 : i32
    return %arg0, %arg1 : i32, i32
  }
}

</mosaic_0001>

<llo_original>
// kernel: tpu_custom_call.1
$region0: #{tpu_custom_call.1}
  #allocation0 [shape = 'u32[]', space=smem, size = 0x4, offset = 0x4, fixed_abs, tag = 'smem constant byte address 0x4 - core index']
  #allocation1 [shape = 'u32[144,128]{1,0:T(1,128)}', space=vmem, size = 0x12000, scoped, tag = 'internal scratch']
  #allocation2 [shape = 'f32[256,128]{1,0:T(8,128)}', space=vmem, size = 0x20000, scoped, tag = 'scratch operand']
  %s0 = inlined_call_operand.hbm [shape: bf16[1024,1024], index: 0, kind: input, shape index: {}]
  %s1 = inlined_call_operand.hbm [shape: bf16[1024,128], index: 1, kind: input, shape index: {}]
  %s2 = inlined_call_operand.hbm [shape: f32[1,128], index: 2, kind: input, shape index: {}]
  %s3 = inlined_call_operand.hbm [shape: f32[1,128], index: 3, kind: input, shape index: {}]
  %s4 = inlined_call_operand.hbm [shape: bf16[1024,128], index: 4, kind: output, shape index: {}]
  %s5 = sld [smem:[#allocation0]]
  $region73: #{tpu_custom_call.1} parent=0
    _
  %s7 = ssub.s32 1, %s5
  %s8 = scalar_select 0, %s7, %s5
  $region1: #{tpu_custom_call.1} parent=0
    #allocation3 [shape = 'u8[1048576]{0}', space=vmem, size = 0x100000, scoped, tag = 'input window, operand 0']
    #allocation4 [shape = 's32[2]{0}', space=sflag, size = 0x8, scoped, tag = 'scoped memory for tpu_custom_call.1']
    #allocation5 [shape = 's32[2]{0}', space=sflag, size = 0x8, scoped, tag = 'scoped memory for tpu_custom_call.1']
    #allocation6 [shape = 'u8[262144]{0}', space=vmem, size = 0x40000, scoped, tag = 'input window, operand 1, single buffered']
    #allocation7 [shape = 's32[1]{0}', space=sflag, size = 0x4, scoped, tag = 'scoped memory for tpu_custom_call.1']
    #allocation8 [shape = 'u8[512]{0}', space=vmem, size = 0x400, scoped, tag = 'input window, operand 2, single buffered']
    #allocation9 [shape = 'u8[512]{0}', space=vmem, size = 0x400, scoped, tag = 'input window, operand 3, single buffered']
    #allocation10 [shape = 's32[1]{0}', space=sflag, size = 0x4, scoped, tag = 'scoped memory for tpu_custom_call.1']
    #allocation11 [shape = 'u8[131072]{0}', space=vmem, size = 0x20000, scoped, tag = 'output window, operand 0']
    %9 = vsyncpa [#allocation4], 0
    %s10 = scalar_lea.sflag [#allocation4], 1
    %11 = vsyncpa %s10, 0
    %12 = vsyncpa [#allocation7], 0
    %13 = vsyncpa [#allocation10], 0
    %14 = vsyncpa [#allocation5], 0
    %s15 = scalar_lea.sflag [#allocation5], 1
    %16 = vsyncpa %s15, 0
    loop: start=0, step=1, limit=6
    $region2: #{tpu_custom_call.1} parent=1 // loop_pre_header
      _
    $region3: #{tpu_custom_call.1} parent=1 // loop_header
      %s18 = sphi 0, %s22
      %p19 = scmp.ge.s32.totalorder %s18, 6
      %s25 = sphi 0, %s44
      %s26 = sphi 0, %s40
      %s27 = sphi 0, %s36
      %s28 = sphi 0, %s25
      %s29 = sphi 0, %s26
      %s30 = sphi 0, %s27
      %s31 = sphi 0, %s28
      %s32 = sphi 0, %s29
      %s33 = sphi 0, %s30
      %s49 = sphi 0, %s51
      %s52 = sphi 0, %s49
      %s53 = sphi 0, %s52
      %s69 = sphi 0, %s53
      %s77 = sphi 0, %s79
      %s80 = sphi 0, %s77
      %s81 = sphi 0, %s80
      %s97 = sphi 0, %s81
      %s103 = sphi 0, %s105
      %s106 = sphi 0, %s103
      %s107 = sphi 0, %s106
      %s123 = sphi 0, %s107
      %s129 = sphi 0, %s131
      %s132 = sphi 0, %s129
      %s133 = sphi 0, %s132
      %s149 = sphi 0, %s133
      %s157 = sphi 0, %s159
      %s160 = sphi 0, %s157
      %s161 = sphi 0, %s160
      %s177 = sphi 0, %s161
    $region4: #{tpu_custom_call.1} parent=1 // loop_header_branch
      %21 = sbr.rel (%p19) target = $region8
    $region5: #{tpu_custom_call.1} parent=1 // loop_body
      %s23 = ssub.s32 %s18, 1
      %s24 = ssub.s32 %s18, 2
      %s34 = sadd.s32 1, %s27
      %p35 = scmp.ge.s32.totalorder %s34, 1
      %s36 = scalar_select %p35, 0, %s34
      %s37 = sadd.s32 1, %s26
      %s38 = scalar_select %p35, %s37, %s26
      %p39 = scmp.ge.s32.totalorder %s38, 1
      %s40 = scalar_select %p39, 0, %s38
      %s41 = sadd.s32 1, %s25
      %s42 = scalar_select %p39, %s41, %s25
      %p43 = scmp.ge.s32.totalorder %s42, 4
      %s44 = scalar_select %p43, 0, %s42
      %s45 = ssub.s32 %s25, %s44
      %s46 = ssub.s32 %s27, %s36
      %s47 = sor.u32 %s45, %s46
      %p48 = scmp.eq.s32.totalorder %s47, 0
      %s50 = sadd.s32 %s49, 1
      %s51 = scalar_select %p48, %s49, %s50
      %p54 = pneg %p48
      %p55 = scmp.eq.s32.totalorder %s18, 3
      %p56 = por %p54, %p55
      %p57 = scmp.ne.s32.totalorder %s49, %s52
      %p58 = scmp.eq.s32.totalorder %s18, 0
      %p59 = por %p57, %p58
      %p60 = scmp.ne.s32.totalorder %s49, %s52
      %p61 = scmp.eq.s32.totalorder %s23, 3
      %p62 = por %p60, %p61
      %p63 = scmp.ne.s32.totalorder %s52, %s53
      %p64 = scmp.eq.s32.totalorder %s23, 0
      %p65 = por %p63, %p64
      %p66 = scmp.ne.s32.totalorder %s52, %s53
      %p67 = scmp.eq.s32.totalorder %s24, 3
      %p68 = por %p66, %p67
      %p70 = scmp.ne.s32.totalorder %s53, %s69
      %p71 = scmp.eq.s32.totalorder %s24, 0
      %p72 = por %p70, %p71
      %s73 = ssub.s32 %s27, %s36
      %s74 = ssub.s32 %s26, %s40
      %s75 = sor.u32 %s73, %s74
      %p76 = scmp.eq.s32.totalorder %s75, 0
      %s78 = sadd.s32 %s77, 1
      %s79 = scalar_select %p76, %s77, %s78
      %p82 = pneg %p76
      %p83 = scmp.eq.s32.totalorder %s18, 3
      %p84 = por %p82, %p83
      %p85 = scmp.ne.s32.totalorder %s77, %s80
      %p86 = scmp.eq.s32.totalorder %s18, 0
      %p87 = por %p85, %p86
      %p88 = scmp.ne.s32.totalorder %s77, %s80
      %p89 = scmp.eq.s32.totalorder %s23, 3
      %p90 = por %p88, %p89
      %p91 = scmp.ne.s32.totalorder %s80, %s81
      %p92 = scmp.eq.s32.totalorder %s23, 0
      %p93 = por %p91, %p92
      %p94 = scmp.ne.s32.totalorder %s80, %s81
      %p95 = scmp.eq.s32.totalorder %s24, 3
      %p96 = por %p94, %p95
      %p98 = scmp.ne.s32.totalorder %s81, %s97
      %p99 = scmp.eq.s32.totalorder %s24, 0
      %p100 = por %p98, %p99
      %s101 = ssub.s32 %s26, %s40
      %p102 = scmp.eq.s32.totalorder %s101, 0
      %s104 = sadd.s32 %s103, 1
      %s105 = scalar_select %p102, %s103, %s104
      %p108 = pneg %p102
      %p109 = scmp.eq.s32.totalorder %s18, 3
      %p110 = por %p108, %p109
      %p111 = scmp.ne.s32.totalorder %s103, %s106
      %p112 = scmp.eq.s32.totalorder %s18, 0
      %p113 = por %p111, %p112
      %p114 = scmp.ne.s32.totalorder %s103, %s106
      %p115 = scmp.eq.s32.totalorder %s23, 3
      %p116 = por %p114, %p115
      %p117 = scmp.ne.s32.totalorder %s106, %s107
      %p118 = scmp.eq.s32.totalorder %s23, 0
      %p119 = por %p117, %p118
      %p120 = scmp.ne.s32.totalorder %s106, %s107
      %p121 = scmp.eq.s32.totalorder %s24, 3
      %p122 = por %p120, %p121
      %p124 = scmp.ne.s32.totalorder %s107, %s123
      %p125 = scmp.eq.s32.totalorder %s24, 0
      %p126 = por %p124, %p125
      %s127 = ssub.s32 %s26, %s40
      %p128 = scmp.eq.s32.totalorder %s127, 0
      %s130 = sadd.s32 %s129, 1
      %s131 = scalar_select %p128, %s129, %s130
      %p134 = pneg %p128
      %p135 = scmp.eq.s32.totalorder %s18, 3
      %p136 = por %p134, %p135
      %p137 = scmp.ne.s32.totalorder %s129, %s132
      %p138 = scmp.eq.s32.totalorder %s18, 0
      %p139 = por %p137, %p138
      %p140 = scmp.ne.s32.totalorder %s129, %s132
      %p141 = scmp.eq.s32.totalorder %s23, 3
      %p142 = por %p140, %p141
      %p143 = scmp.ne.s32.totalorder %s132, %s133
      %p144 = scmp.eq.s32.totalorder %s23, 0
      %p145 = por %p143, %p144
      %p146 = scmp.ne.s32.totalorder %s132, %s133
      %p147 = scmp.eq.s32.totalorder %s24, 3
      %p148 = por %p146, %p147
      %p150 = scmp.ne.s32.totalorder %s133, %s149
      %p151 = scmp.eq.s32.totalorder %s24, 0
      %p152 = por %p150, %p151
      %s153 = ssub.s32 %s25, %s44
      %s154 = ssub.s32 %s26, %s40
      %s155 = sor.u32 %s153, %s154
      %p156 = scmp.eq.s32.totalorder %s155, 0
      %s158 = sadd.s32 %s157, 1
      %s159 = scalar_select %p156, %s157, %s158
      %p162 = pneg %p156
      %p163 = scmp.eq.s32.totalorder %s18, 3
      %p164 = por %p162, %p163
      %p165 = scmp.ne.s32.totalorder %s157, %s160
      %p166 = scmp.eq.s32.totalorder %s18, 0
      %p167 = por %p165, %p166
      %p168 = scmp.ne.s32.totalorder %s157, %s160
      %p169 = scmp.eq.s32.totalorder %s23, 3
      %p170 = por %p168, %p169
      %p171 = scmp.ne.s32.totalorder %s160, %s161
      %p172 = scmp.eq.s32.totalorder %s23, 0
      %p173 = por %p171, %p172
      %p174 = scmp.ne.s32.totalorder %s160, %s161
      %p175 = scmp.eq.s32.totalorder %s24, 3
      %p176 = por %p174, %p175
      %p178 = scmp.ne.s32.totalorder %s161, %s177
      %p179 = scmp.eq.s32.totalorder %s24, 0
      %p180 = por %p178, %p179
      %p181 = scmp.le.s32.totalorder 1, %s18
      %p182 = scmp.lt.s32.totalorder %s18, 5
      %p183 = pnand %p181, %p182
      %p184 = pneg %p183
      // Predicated region
      $region9: #{tpu_custom_call.1} parent=5 // pred_check
        _
      $region10: #{tpu_custom_call.1} parent=5 // pred_check_branch
        %186 = sbr.rel (%p183) target = $region12
      $region11: #{tpu_custom_call.1} parent=5 // pred_region
        %s187 = ssub.s32 %s18, 1
        // Predicated region
        $region13: #{tpu_custom_call.1} parent=11 // pred_check
          %p188 = pneg %p93
        $region14: #{tpu_custom_call.1} parent=11 // pred_check_branch
          %190 = sbr.rel (%p188) target = $region16
        $region15: #{tpu_custom_call.1} parent=11 // pred_region
          %s191 = smul.u32 128, %s30
          %s193 = ssub.s32 8192, 8192
          %194 = vsyncadd [#allocation7], %s193
          %s195 = sadd.s32 %s29, %s191
          %s196 = smul.addr %s195, 64
          %s197 = scalar_lea.hbm %s1, %s196
          %s198 = sshll.u32 [#allocation6], 4
          %s199 = int_to_ptr.vmem [resolvable:$true] %s198
          %204 = dma.hbm_to_vmem [thread:$0]  %s197, 8192, %s199, [#allocation7], 64, 64, 4
        $region16: #{tpu_custom_call.1} parent=11 // pred_fallthru
          _
        // Predicated region
        $region17: #{tpu_custom_call.1} parent=11 // pred_check
          %p205 = pneg %p119
        $region18: #{tpu_custom_call.1} parent=11 // pred_check_branch
          %207 = sbr.rel (%p205) target = $region20
        $region19: #{tpu_custom_call.1} parent=11 // pred_region
          %s209 = ssub.s32 16, 16
          %210 = vsyncadd [#allocation7], %s209
          %s211 = smul.addr %s29, 16
          %s212 = scalar_lea.hbm %s2, %s211
          %s214 = sshll.u32 [#allocation8], 4
          %s215 = int_to_ptr.vmem [resolvable:$true] %s214
          %217 = dma.hbm_to_vmem [thread:$0]  %s212, 16, %s215, [#allocation7]
        $region20: #{tpu_custom_call.1} parent=11 // pred_fallthru
          _
        // Predicated region
        $region21: #{tpu_custom_call.1} parent=11 // pred_check
          %p218 = pneg %p145
        $region22: #{tpu_custom_call.1} parent=11 // pred_check_branch
          %220 = sbr.rel (%p218) target = $region24
        $region23: #{tpu_custom_call.1} parent=11 // pred_region
          %s222 = ssub.s32 16, 16
          %223 = vsyncadd [#allocation10], %s222
          %s224 = smul.addr %s29, 16
          %s225 = scalar_lea.hbm %s3, %s224
          %s227 = sshll.u32 [#allocation9], 4
          %s228 = int_to_ptr.vmem [resolvable:$true] %s227
          %230 = dma.hbm_to_vmem [thread:$0]  %s225, 16, %s228, [#allocation10]
        $region24: #{tpu_custom_call.1} parent=11 // pred_fallthru
          _
      $region12: #{tpu_custom_call.1} parent=5 // pred_fallthru
        _
      %p231 = scmp.lt.s32.totalorder %s18, 4
      // Predicated region
      $region25: #{tpu_custom_call.1} parent=5 // pred_check
        %p232 = pneg %p231
      $region26: #{tpu_custom_call.1} parent=5 // pred_check_branch
        %234 = sbr.rel (%p232) target = $region28
      $region27: #{tpu_custom_call.1} parent=5 // pred_region
        // Predicated region
        $region29: #{tpu_custom_call.1} parent=27 // pred_check
          %p235 = pneg %p59
        $region30: #{tpu_custom_call.1} parent=27 // pred_check_branch
          %237 = sbr.rel (%p235) target = $region32
        $region31: #{tpu_custom_call.1} parent=27 // pred_region
          %s238 = sand.u32 %s49, 1
          %s239 = scalar_lea.sflag [#allocation4], %s238
          %s240 = sand.u32 %s49, 1
          %s241 = smul.addr %s240, 1024
          %s242 = scalar_lea.vmem [#allocation3], %s241
          %s243 = smul.u32 32, %s25
          %s244 = smul.u32 8, %s27
          %s246 = ssub.s32 16384, 16384
          %247 = vsyncadd %s239, %s246
          %s248 = smul.addr %s243, 8
          %s249 = sadd.s32 %s244, %s248
          %s250 = smul.addr %s249, 64
          %s251 = scalar_lea.hbm %s0, %s250
          %s252 = sshll.u32 %s242, 4
          %s253 = int_to_ptr.vmem [resolvable:$true] %s252
          %258 = dma.hbm_to_vmem [thread:$0]  %s251, 16384, %s253, %s239, 512, 512, 32
        $region32: #{tpu_custom_call.1} parent=27 // pred_fallthru
          _
      $region28: #{tpu_custom_call.1} parent=5 // pred_fallthru
        _
      %p259 = scmp.le.s32.totalorder 1, %s18
      %p260 = scmp.lt.s32.totalorder %s18, 5
      %p261 = pnand %p259, %p260
      %p262 = pneg %p261
      // Predicated region
      $region33: #{tpu_custom_call.1} parent=5 // pred_check
        _
      $region34: #{tpu_custom_call.1} parent=5 // pred_check_branch
        %264 = sbr.rel (%p261) target = $region36
      $region35: #{tpu_custom_call.1} parent=5 // pred_region
        %s265 = ssub.s32 %s18, 1
        %s266 = sand.u32 %s52, 1
        %s267 = scalar_lea.sflag [#allocation4], %s266
        %s268 = sand.u32 %s52, 1
        %s269 = smul.addr %s268, 1024
        %s270 = scalar_lea.vmem [#allocation3], %s269
        // Predicated region
        $region37: #{tpu_custom_call.1} parent=35 // pred_check
          %p271 = pneg %p65
        $region38: #{tpu_custom_call.1} parent=35 // pred_check_branch
          %273 = sbr.rel (%p271) target = $region40
        $region39: #{tpu_custom_call.1} parent=35 // pred_region
          %274 = dma.done %s267, 16384
        $region40: #{tpu_custom_call.1} parent=35 // pred_fallthru
          _
        // Predicated region
        $region41: #{tpu_custom_call.1} parent=35 // pred_check
          %p275 = pneg %p93
        $region42: #{tpu_custom_call.1} parent=35 // pred_check_branch
          %277 = sbr.rel (%p275) target = $region44
        $region43: #{tpu_custom_call.1} parent=35 // pred_region
          %278 = dma.done [#allocation7], 8192
        $region44: #{tpu_custom_call.1} parent=35 // pred_fallthru
          _
        // Predicated region
        $region45: #{tpu_custom_call.1} parent=35 // pred_check
          %p279 = pneg %p119
        $region46: #{tpu_custom_call.1} parent=35 // pred_check_branch
          %281 = sbr.rel (%p279) target = $region48
        $region47: #{tpu_custom_call.1} parent=35 // pred_region
          %282 = dma.done [#allocation7], 16
        $region48: #{tpu_custom_call.1} parent=35 // pred_fallthru
          _
        // Predicated region
        $region49: #{tpu_custom_call.1} parent=35 // pred_check
          %p283 = pneg %p145
        $region50: #{tpu_custom_call.1} parent=35 // pred_check_branch
          %285 = sbr.rel (%p283) target = $region52
        $region51: #{tpu_custom_call.1} parent=35 // pred_region
          %286 = dma.done [#allocation10], 16
        $region52: #{tpu_custom_call.1} parent=35 // pred_fallthru
          _
        %s287 = sand.u32 %s52, 1
        %s288 = scalar_lea.sflag [#allocation4], %s287
        %s289 = sand.u32 %s52, 1
        %s290 = smul.addr %s289, 1024
        %s291 = scalar_lea.vmem [#allocation3], %s290
        %p292 = pneg %p65
        %p293 = pneg %p62
        %p294 = pneg %p93
        %p295 = pneg %p90
        %p296 = pneg %p119
        %p297 = pneg %p116
        %p298 = pneg %p145
        %p299 = pneg %p142
        %p300 = pneg %p173
        %p301 = pneg %p170
        %s302 = sand.u32 %s160, 1
        %s303 = scalar_lea.sflag [#allocation5], %s302
        %s304 = sand.u32 %s160, 1
        %s305 = smul.addr %s304, 128
        %s306 = scalar_lea.vmem [#allocation11], %s305
        %s307 = smul.u32 32, %s28
        %s308 = smul.u32 8, %s30
        %s309 = smul.u32 128, %s30
        %s310 = smul.u32 32, %s28
        %p312 = scmp.eq.s32.totalorder %s30, 0
        // Predicated region
        $region53: #{tpu_custom_call.1} parent=35 // pred_check
          %p313 = pneg %p312
        $region54: #{tpu_custom_call.1} parent=35 // pred_check_branch
          %315 = sbr.rel (%p313) target = $region56
        $region55: #{tpu_custom_call.1} parent=35 // pred_region
          %316 = vst [vmem:[#allocation2] sm:$0xff] 0.0
          %317 = vst [vmem:[#allocation2 + $0x8] sm:$0xff] 0.0
          %318 = vst [vmem:[#allocation2 + $0x10] sm:$0xff] 0.0
          %319 = vst [vmem:[#allocation2 + $0x18] sm:$0xff] 0.0
          %320 = vst [vmem:[#allocation2 + $0x20] sm:$0xff] 0.0
          %321 = vst [vmem:[#allocation2 + $0x28] sm:$0xff] 0.0
          %322 = vst [vmem:[#allocation2 + $0x30] sm:$0xff] 0.0
          %323 = vst [vmem:[#allocation2 + $0x38] sm:$0xff] 0.0
          %324 = vst [vmem:[#allocation2 + $0x40] sm:$0xff] 0.0
          %325 = vst [vmem:[#allocation2 + $0x48] sm:$0xff] 0.0
          %326 = vst [vmem:[#allocation2 + $0x50] sm:$0xff] 0.0
          %327 = vst [vmem:[#allocation2 + $0x58] sm:$0xff] 0.0
          %328 = vst [vmem:[#allocation2 + $0x60] sm:$0xff] 0.0
          %329 = vst [vmem:[#allocation2 + $0x68] sm:$0xff] 0.0
          %330 = vst [vmem:[#allocation2 + $0x70] sm:$0xff] 0.0
          %331 = vst [vmem:[#allocation2 + $0x78] sm:$0xff] 0.0
          %332 = vst [vmem:[#allocation2 + $0x80] sm:$0xff] 0.0
          %333 = vst [vmem:[#allocation2 + $0x88] sm:$0xff] 0.0
          %334 = vst [vmem:[#allocation2 + $0x90] sm:$0xff] 0.0
          %335 = vst [vmem:[#allocation2 + $0x98] sm:$0xff] 0.0
          %336 = vst [vmem:[#allocation2 + $0xa0] sm:$0xff] 0.0
          %337 = vst [vmem:[#allocation2 + $0xa8] sm:$0xff] 0.0
          %338 = vst [vmem:[#allocation2 + $0xb0] sm:$0xff] 0.0
          %339 = vst [vmem:[#allocation2 + $0xb8] sm:$0xff] 0.0
          %340 = vst [vmem:[#allocation2 + $0xc0] sm:$0xff] 0.0
          %341 = vst [vmem:[#allocation2 + $0xc8] sm:$0xff] 0.0
          %342 = vst [vmem:[#allocation2 + $0xd0] sm:$0xff] 0.0
          %343 = vst [vmem:[#allocation2 + $0xd8] sm:$0xff] 0.0
          %344 = vst [vmem:[#allocation2 + $0xe0] sm:$0xff] 0.0
          %345 = vst [vmem:[#allocation2 + $0xe8] sm:$0xff] 0.0
          %346 = vst [vmem:[#allocation2 + $0xf0] sm:$0xff] 0.0
          %347 = vst [vmem:[#allocation2 + $0xf8] sm:$0xff] 0.0
        $region56: #{tpu_custom_call.1} parent=35 // pred_fallthru
          _
        %v348 = vld [vmem:[#allocation2] sm:$0xff]
        %v349 = vld [vmem:[#allocation2 + $0x8] sm:$0xff]
        %v350 = vld [vmem:[#allocation2 + $0x10] sm:$0xff]
        %v351 = vld [vmem:[#allocation2 + $0x18] sm:$0xff]
        %v352 = vld [vmem:[#allocation2 + $0x20] sm:$0xff]
        %v353 = vld [vmem:[#allocation2 + $0x28] sm:$0xff]
        %v354 = vld [vmem:[#allocation2 + $0x30] sm:$0xff]
        %v355 = vld [vmem:[#allocation2 + $0x38] sm:$0xff]
        %v356 = vld [vmem:[#allocation2 + $0x40] sm:$0xff]
        %v357 = vld [vmem:[#allocation2 + $0x48] sm:$0xff]
        %v358 = vld [vmem:[#allocation2 + $0x50] sm:$0xff]
        %v359 = vld [vmem:[#allocation2 + $0x58] sm:$0xff]
        %v360 = vld [vmem:[#allocation2 + $0x60] sm:$0xff]
        %v361 = vld [vmem:[#allocation2 + $0x68] sm:$0xff]
        %v362 = vld [vmem:[#allocation2 + $0x70] sm:$0xff]
        %v363 = vld [vmem:[#allocation2 + $0x78] sm:$0xff]
        %v364 = vld [vmem:[#allocation2 + $0x80] sm:$0xff]
        %v365 = vld [vmem:[#allocation2 + $0x88] sm:$0xff]
        %v366 = vld [vmem:[#allocation2 + $0x90] sm:$0xff]
        %v367 = vld [vmem:[#allocation2 + $0x98] sm:$0xff]
        %v368 = vld [vmem:[#allocation2 + $0xa0] sm:$0xff]
        %v369 = vld [vmem:[#allocation2 + $0xa8] sm:$0xff]
        %v370 = vld [vmem:[#allocation2 + $0xb0] sm:$0xff]
        %v371 = vld [vmem:[#allocation2 + $0xb8] sm:$0xff]
        %v372 = vld [vmem:[#allocation2 + $0xc0] sm:$0xff]
        %v373 = vld [vmem:[#allocation2 + $0xc8] sm:$0xff]
        %v374 = vld [vmem:[#allocation2 + $0xd0] sm:$0xff]
        %v375 = vld [vmem:[#allocation2 + $0xd8] sm:$0xff]
        %v376 = vld [vmem:[#allocation2 + $0xe0] sm:$0xff]
        %v377 = vld [vmem:[#allocation2 + $0xe8] sm:$0xff]
        %v378 = vld [vmem:[#allocation2 + $0xf0] sm:$0xff]
        %v379 = vld [vmem:[#allocation2 + $0xf8] sm:$0xff]
        %v380 = vld [vmem:[%s270] sm:$0xff]
        %v381 = vld [vmem:[%s270 + $0x8] sm:$0xff]
        %v382 = vld [vmem:[%s270 + $0x10] sm:$0xff]
        %v383 = vld [vmem:[%s270 + $0x18] sm:$0xff]
        %v384 = vld [vmem:[%s270 + $0x20] sm:$0xff]
        %v385 = vld [vmem:[%s270 + $0x28] sm:$0xff]
        %v386 = vld [vmem:[%s270 + $0x30] sm:$0xff]
        %v387 = vld [vmem:[%s270 + $0x38] sm:$0xff]
        %v388 = vld [vmem:[%s270 + $0x40] sm:$0xff]
        %v389 = vld [vmem:[%s270 + $0x48] sm:$0xff]
        %v390 = vld [vmem:[%s270 + $0x50] sm:$0xff]
        %v391 = vld [vmem:[%s270 + $0x58] sm:$0xff]
        %v392 = vld [vmem:[%s270 + $0x60] sm:$0xff]
        %v393 = vld [vmem:[%s270 + $0x68] sm:$0xff]
        %v394 = vld [vmem:[%s270 + $0x70] sm:$0xff]
        %v395 = vld [vmem:[%s270 + $0x78] sm:$0xff]
        %v396 = vld [vmem:[%s270 + $0x80] sm:$0xff]
        %v397 = vld [vmem:[%s270 + $0x88] sm:$0xff]
        %v398 = vld [vmem:[%s270 + $0x90] sm:$0xff]
        %v399 = vld [vmem:[%s270 + $0x98] sm:$0xff]
        %v400 = vld [vmem:[%s270 + $0xa0] sm:$0xff]
        %v401 = vld [vmem:[%s270 + $0xa8] sm:$0xff]
        %v402 = vld [vmem:[%s270 + $0xb0] sm:$0xff]
        %v403 = vld [vmem:[%s270 + $0xb8] sm:$0xff]
        %v404 = vld [vmem:[%s270 + $0xc0] sm:$0xff]
        %v405 = vld [vmem:[%s270 + $0xc8] sm:$0xff]
        %v406 = vld [vmem:[%s270 + $0xd0] sm:$0xff]
        %v407 = vld [vmem:[%s270 + $0xd8] sm:$0xff]
        %v408 = vld [vmem:[%s270 + $0xe0] sm:$0xff]
        %v409 = vld [vmem:[%s270 + $0xe8] sm:$0xff]
        %v410 = vld [vmem:[%s270 + $0xf0] sm:$0xff]
        %v411 = vld [vmem:[%s270 + $0xf8] sm:$0xff]
        %v412 = vld [vmem:[%s270 + $0x100] sm:$0xff]
        %v413 = vld [vmem:[%s270 + $0x108] sm:$0xff]
        %v414 = vld [vmem:[%s270 + $0x110] sm:$0xff]
        %v415 = vld [vmem:[%s270 + $0x118] sm:$0xff]
        %v416 = vld [vmem:[%s270 + $0x120] sm:$0xff]
        %v417 = vld [vmem:[%s270 + $0x128] sm:$0xff]
        %v418 = vld [vmem:[%s270 + $0x130] sm:$0xff]
        %v419 = vld [vmem:[%s270 + $0x138] sm:$0xff]
        %v420 = vld [vmem:[%s270 + $0x140] sm:$0xff]
        %v421 = vld [vmem:[%s270 + $0x148] sm:$0xff]
        %v422 = vld [vmem:[%s270 + $0x150] sm:$0xff]
        %v423 = vld [vmem:[%s270 + $0x158] sm:$0xff]
        %v424 = vld [vmem:[%s270 + $0x160] sm:$0xff]
        %v425 = vld [vmem:[%s270 + $0x168] sm:$0xff]
        %v426 = vld [vmem:[%s270 + $0x170] sm:$0xff]
        %v427 = vld [vmem:[%s270 + $0x178] sm:$0xff]
        %v428 = vld [vmem:[%s270 + $0x180] sm:$0xff]
        %v429 = vld [vmem:[%s270 + $0x188] sm:$0xff]
        %v430 = vld [vmem:[%s270 + $0x190] sm:$0xff]
        %v431 = vld [vmem:[%s270 + $0x198] sm:$0xff]
        %v432 = vld [vmem:[%s270 + $0x1a0] sm:$0xff]
        %v433 = vld [vmem:[%s270 + $0x1a8] sm:$0xff]
        %v434 = vld [vmem:[%s270 + $0x1b0] sm:$0xff]
        %v435 = vld [vmem:[%s270 + $0x1b8] sm:$0xff]
        %v436 = vld [vmem:[%s270 + $0x1c0] sm:$0xff]
        %v437 = vld [vmem:[%s270 + $0x1c8] sm:$0xff]
        %v438 = vld [vmem:[%s270 + $0x1d0] sm:$0xff]
        %v439 = vld [vmem:[%s270 + $0x1d8] sm:$0xff]
        %v440 = vld [vmem:[%s270 + $0x1e0] sm:$0xff]
        %v441 = vld [vmem:[%s270 + $0x1e8] sm:$0xff]
        %v442 = vld [vmem:[%s270 + $0x1f0] sm:$0xff]
        %v443 = vld [vmem:[%s270 + $0x1f8] sm:$0xff]
        %v444 = vld [vmem:[%s270 + $0x200] sm:$0xff]
        %v445 = vld [vmem:[%s270 + $0x208] sm:$0xff]
        %v446 = vld [vmem:[%s270 + $0x210] sm:$0xff]
        %v447 = vld [vmem:[%s270 + $0x218] sm:$0xff]
        %v448 = vld [vmem:[%s270 + $0x220] sm:$0xff]
        %v449 = vld [vmem:[%s270 + $0x228] sm:$0xff]
        %v450 = vld [vmem:[%s270 + $0x230] sm:$0xff]
        %v451 = vld [vmem:[%s270 + $0x238] sm:$0xff]
        %v452 = vld [vmem:[%s270 + $0x240] sm:$0xff]
        %v453 = vld [vmem:[%s270 + $0x248] sm:$0xff]
        %v454 = vld [vmem:[%s270 + $0x250] sm:$0xff]
        %v455 = vld [vmem:[%s270 + $0x258] sm:$0xff]
        %v456 = vld [vmem:[%s270 + $0x260] sm:$0xff]
        %v457 = vld [vmem:[%s270 + $0x268] sm:$0xff]
        %v458 = vld [vmem:[%s270 + $0x270] sm:$0xff]
        %v459 = vld [vmem:[%s270 + $0x278] sm:$0xff]
        %v460 = vld [vmem:[%s270 + $0x280] sm:$0xff]
        %v461 = vld [vmem:[%s270 + $0x288] sm:$0xff]
        %v462 = vld [vmem:[%s270 + $0x290] sm:$0xff]
        %v463 = vld [vmem:[%s270 + $0x298] sm:$0xff]
        %v464 = vld [vmem:[%s270 + $0x2a0] sm:$0xff]
        %v465 = vld [vmem:[%s270 + $0x2a8] sm:$0xff]
        %v466 = vld [vmem:[%s270 + $0x2b0] sm:$0xff]
        %v467 = vld [vmem:[%s270 + $0x2b8] sm:$0xff]
        %v468 = vld [vmem:[%s270 + $0x2c0] sm:$0xff]
        %v469 = vld [vmem:[%s270 + $0x2c8] sm:$0xff]
        %v470 = vld [vmem:[%s270 + $0x2d0] sm:$0xff]
        %v471 = vld [vmem:[%s270 + $0x2d8] sm:$0xff]
        %v472 = vld [vmem:[%s270 + $0x2e0] sm:$0xff]
        %v473 = vld [vmem:[%s270 + $0x2e8] sm:$0xff]
        %v474 = vld [vmem:[%s270 + $0x2f0] sm:$0xff]
        %v475 = vld [vmem:[%s270 + $0x2f8] sm:$0xff]
        %v476 = vld [vmem:[%s270 + $0x300] sm:$0xff]
        %v477 = vld [vmem:[%s270 + $0x308] sm:$0xff]
        %v478 = vld [vmem:[%s270 + $0x310] sm:$0xff]
        %v479 = vld [vmem:[%s270 + $0x318] sm:$0xff]
        %v480 = vld [vmem:[%s270 + $0x320] sm:$0xff]
        %v481 = vld [vmem:[%s270 + $0x328] sm:$0xff]
        %v482 = vld [vmem:[%s270 + $0x330] sm:$0xff]
        %v483 = vld [vmem:[%s270 + $0x338] sm:$0xff]
        %v484 = vld [vmem:[%s270 + $0x340] sm:$0xff]
        %v485 = vld [vmem:[%s270 + $0x348] sm:$0xff]
        %v486 = vld [vmem:[%s270 + $0x350] sm:$0xff]
        %v487 = vld [vmem:[%s270 + $0x358] sm:$0xff]
        %v488 = vld [vmem:[%s270 + $0x360] sm:$0xff]
        %v489 = vld [vmem:[%s270 + $0x368] sm:$0xff]
        %v490 = vld [vmem:[%s270 + $0x370] sm:$0xff]
        %v491 = vld [vmem:[%s270 + $0x378] sm:$0xff]
        %v492 = vld [vmem:[%s270 + $0x380] sm:$0xff]
        %v493 = vld [vmem:[%s270 + $0x388] sm:$0xff]
        %v494 = vld [vmem:[%s270 + $0x390] sm:$0xff]
        %v495 = vld [vmem:[%s270 + $0x398] sm:$0xff]
        %v496 = vld [vmem:[%s270 + $0x3a0] sm:$0xff]
        %v497 = vld [vmem:[%s270 + $0x3a8] sm:$0xff]
        %v498 = vld [vmem:[%s270 + $0x3b0] sm:$0xff]
        %v499 = vld [vmem:[%s270 + $0x3b8] sm:$0xff]
        %v500 = vld [vmem:[%s270 + $0x3c0] sm:$0xff]
        %v501 = vld [vmem:[%s270 + $0x3c8] sm:$0xff]
        %v502 = vld [vmem:[%s270 + $0x3d0] sm:$0xff]
        %v503 = vld [vmem:[%s270 + $0x3d8] sm:$0xff]
        %v504 = vld [vmem:[%s270 + $0x3e0] sm:$0xff]
        %v505 = vld [vmem:[%s270 + $0x3e8] sm:$0xff]
        %v506 = vld [vmem:[%s270 + $0x3f0] sm:$0xff]
        %v507 = vld [vmem:[%s270 + $0x3f8] sm:$0xff]
        %v508 = vld [vmem:[#allocation6] sm:$0xf]
        %v509 = vld [vmem:[#allocation6 + $0x4] sm:$0xf]
        %v510 = vld [vmem:[#allocation6 + $0x8] sm:$0xf]
        %v511 = vld [vmem:[#allocation6 + $0xc] sm:$0xf]
        %v512 = vld [vmem:[#allocation6 + $0x10] sm:$0xf]
        %v513 = vld [vmem:[#allocation6 + $0x14] sm:$0xf]
        %v514 = vld [vmem:[#allocation6 + $0x18] sm:$0xf]
        %v515 = vld [vmem:[#allocation6 + $0x1c] sm:$0xf]
        %v516 = vld [vmem:[#allocation6 + $0x20] sm:$0xf]
        %v517 = vld [vmem:[#allocation6 + $0x24] sm:$0xf]
        %v518 = vld [vmem:[#allocation6 + $0x28] sm:$0xf]
        %v519 = vld [vmem:[#allocation6 + $0x2c] sm:$0xf]
        %v520 = vld [vmem:[#allocation6 + $0x30] sm:$0xf]
        %v521 = vld [vmem:[#allocation6 + $0x34] sm:$0xf]
        %v522 = vld [vmem:[#allocation6 + $0x38] sm:$0xf]
        %v523 = vld [vmem:[#allocation6 + $0x3c] sm:$0xf]
        %v524 = vld [vmem:[#allocation6 + $0x40] sm:$0xf]
        %v525 = vld [vmem:[#allocation6 + $0x44] sm:$0xf]
        %v526 = vld [vmem:[#allocation6 + $0x48] sm:$0xf]
        %v527 = vld [vmem:[#allocation6 + $0x4c] sm:$0xf]
        %v528 = vld [vmem:[#allocation6 + $0x50] sm:$0xf]
        %v529 = vld [vmem:[#allocation6 + $0x54] sm:$0xf]
        %v530 = vld [vmem:[#allocation6 + $0x58] sm:$0xf]
        %v531 = vld [vmem:[#allocation6 + $0x5c] sm:$0xf]
        %v532 = vld [vmem:[#allocation6 + $0x60] sm:$0xf]
        %v533 = vld [vmem:[#allocation6 + $0x64] sm:$0xf]
        %v534 = vld [vmem:[#allocation6 + $0x68] sm:$0xf]
        %v535 = vld [vmem:[#allocation6 + $0x6c] sm:$0xf]
        %v536 = vld [vmem:[#allocation6 + $0x70] sm:$0xf]
        %v537 = vld [vmem:[#allocation6 + $0x74] sm:$0xf]
        %v538 = vld [vmem:[#allocation6 + $0x78] sm:$0xf]
        %v539 = vld [vmem:[#allocation6 + $0x7c] sm:$0xf]
        %v540 = vld [vmem:[#allocation6 + $0x80] sm:$0xf]
        %v541 = vld [vmem:[#allocation6 + $0x84] sm:$0xf]
        %v542 = vld [vmem:[#allocation6 + $0x88] sm:$0xf]
        %v543 = vld [vmem:[#allocation6 + $0x8c] sm:$0xf]
        %v544 = vld [vmem:[#allocation6 + $0x90] sm:$0xf]
        %v545 = vld [vmem:[#allocation6 + $0x94] sm:$0xf]
        %v546 = vld [vmem:[#allocation6 + $0x98] sm:$0xf]
        %v547 = vld [vmem:[#allocation6 + $0x9c] sm:$0xf]
        %v548 = vld [vmem:[#allocation6 + $0xa0] sm:$0xf]
        %v549 = vld [vmem:[#allocation6 + $0xa4] sm:$0xf]
        %v550 = vld [vmem:[#allocation6 + $0xa8] sm:$0xf]
        %v551 = vld [vmem:[#allocation6 + $0xac] sm:$0xf]
        %v552 = vld [vmem:[#allocation6 + $0xb0] sm:$0xf]
        %v553 = vld [vmem:[#allocation6 + $0xb4] sm:$0xf]
        %v554 = vld [vmem:[#allocation6 + $0xb8] sm:$0xf]
        %v555 = vld [vmem:[#allocation6 + $0xbc] sm:$0xf]
        %v556 = vld [vmem:[#allocation6 + $0xc0] sm:$0xf]
        %v557 = vld [vmem:[#allocation6 + $0xc4] sm:$0xf]
        %v558 = vld [vmem:[#allocation6 + $0xc8] sm:$0xf]
        %v559 = vld [vmem:[#allocation6 + $0xcc] sm:$0xf]
        %v560 = vld [vmem:[#allocation6 + $0xd0] sm:$0xf]
        %v561 = vld [vmem:[#allocation6 + $0xd4] sm:$0xf]
        %v562 = vld [vmem:[#allocation6 + $0xd8] sm:$0xf]
        %v563 = vld [vmem:[#allocation6 + $0xdc] sm:$0xf]
        %v564 = vld [vmem:[#allocation6 + $0xe0] sm:$0xf]
        %v565 = vld [vmem:[#allocation6 + $0xe4] sm:$0xf]
        %v566 = vld [vmem:[#allocation6 + $0xe8] sm:$0xf]
        %v567 = vld [vmem:[#allocation6 + $0xec] sm:$0xf]
        %v568 = vld [vmem:[#allocation6 + $0xf0] sm:$0xf]
        %v569 = vld [vmem:[#allocation6 + $0xf4] sm:$0xf]
        %v570 = vld [vmem:[#allocation6 + $0xf8] sm:$0xf]
        %v571 = vld [vmem:[#allocation6 + $0xfc] sm:$0xf]
        %v572 = vld [vmem:[#allocation6 + $0x100] sm:$0xf]
        %v573 = vld [vmem:[#allocation6 + $0x104] sm:$0xf]
        %v574 = vld [vmem:[#allocation6 + $0x108] sm:$0xf]
        %v575 = vld [vmem:[#allocation6 + $0x10c] sm:$0xf]
        %v576 = vld [vmem:[#allocation6 + $0x110] sm:$0xf]
        %v577 = vld [vmem:[#allocation6 + $0x114] sm:$0xf]
        %v578 = vld [vmem:[#allocation6 + $0x118] sm:$0xf]
        %v579 = vld [vmem:[#allocation6 + $0x11c] sm:$0xf]
        %v580 = vld [vmem:[#allocation6 + $0x120] sm:$0xf]
        %v581 = vld [vmem:[#allocation6 + $0x124] sm:$0xf]
        %v582 = vld [vmem:[#allocation6 + $0x128] sm:$0xf]
        %v583 = vld [vmem:[#allocation6 + $0x12c] sm:$0xf]
        %v584 = vld [vmem:[#allocation6 + $0x130] sm:$0xf]
        %v585 = vld [vmem:[#allocation6 + $0x134] sm:$0xf]
        %v586 = vld [vmem:[#allocation6 + $0x138] sm:$0xf]
        %v587 = vld [vmem:[#allocation6 + $0x13c] sm:$0xf]
        %v588 = vld [vmem:[#allocation6 + $0x140] sm:$0xf]
        %v589 = vld [vmem:[#allocation6 + $0x144] sm:$0xf]
        %v590 = vld [vmem:[#allocation6 + $0x148] sm:$0xf]
        %v591 = vld [vmem:[#allocation6 + $0x14c] sm:$0xf]
        %v592 = vld [vmem:[#allocation6 + $0x150] sm:$0xf]
        %v593 = vld [vmem:[#allocation6 + $0x154] sm:$0xf]
        %v594 = vld [vmem:[#allocation6 + $0x158] sm:$0xf]
        %v595 = vld [vmem:[#allocation6 + $0x15c] sm:$0xf]
        %v596 = vld [vmem:[#allocation6 + $0x160] sm:$0xf]
        %v597 = vld [vmem:[#allocation6 + $0x164] sm:$0xf]
        %v598 = vld [vmem:[#allocation6 + $0x168] sm:$0xf]
        %v599 = vld [vmem:[#allocation6 + $0x16c] sm:$0xf]
        %v600 = vld [vmem:[#allocation6 + $0x170] sm:$0xf]
        %v601 = vld [vmem:[#allocation6 + $0x174] sm:$0xf]
        %v602 = vld [vmem:[#allocation6 + $0x178] sm:$0xf]
        %v603 = vld [vmem:[#allocation6 + $0x17c] sm:$0xf]
        %v604 = vld [vmem:[#allocation6 + $0x180] sm:$0xf]
        %v605 = vld [vmem:[#allocation6 + $0x184] sm:$0xf]
        %v606 = vld [vmem:[#allocation6 + $0x188] sm:$0xf]
        %v607 = vld [vmem:[#allocation6 + $0x18c] sm:$0xf]
        %v608 = vld [vmem:[#allocation6 + $0x190] sm:$0xf]
        %v609 = vld [vmem:[#allocation6 + $0x194] sm:$0xf]
        %v610 = vld [vmem:[#allocation6 + $0x198] sm:$0xf]
        %v611 = vld [vmem:[#allocation6 + $0x19c] sm:$0xf]
        %v612 = vld [vmem:[#allocation6 + $0x1a0] sm:$0xf]
        %v613 = vld [vmem:[#allocation6 + $0x1a4] sm:$0xf]
        %v614 = vld [vmem:[#allocation6 + $0x1a8] sm:$0xf]
        %v615 = vld [vmem:[#allocation6 + $0x1ac] sm:$0xf]
        %v616 = vld [vmem:[#allocation6 + $0x1b0] sm:$0xf]
        %v617 = vld [vmem:[#allocation6 + $0x1b4] sm:$0xf]
        %v618 = vld [vmem:[#allocation6 + $0x1b8] sm:$0xf]
        %v619 = vld [vmem:[#allocation6 + $0x1bc] sm:$0xf]
        %v620 = vld [vmem:[#allocation6 + $0x1c0] sm:$0xf]
        %v621 = vld [vmem:[#allocation6 + $0x1c4] sm:$0xf]
        %v622 = vld [vmem:[#allocation6 + $0x1c8] sm:$0xf]
        %v623 = vld [vmem:[#allocation6 + $0x1cc] sm:$0xf]
        %v624 = vld [vmem:[#allocation6 + $0x1d0] sm:$0xf]
        %v625 = vld [vmem:[#allocation6 + $0x1d4] sm:$0xf]
        %v626 = vld [vmem:[#allocation6 + $0x1d8] sm:$0xf]
        %v627 = vld [vmem:[#allocation6 + $0x1dc] sm:$0xf]
        %v628 = vld [vmem:[#allocation6 + $0x1e0] sm:$0xf]
        %v629 = vld [vmem:[#allocation6 + $0x1e4] sm:$0xf]
        %v630 = vld [vmem:[#allocation6 + $0x1e8] sm:$0xf]
        %v631 = vld [vmem:[#allocation6 + $0x1ec] sm:$0xf]
        %v632 = vld [vmem:[#allocation6 + $0x1f0] sm:$0xf]
        %v633 = vld [vmem:[#allocation6 + $0x1f4] sm:$0xf]
        %v634 = vld [vmem:[#allocation6 + $0x1f8] sm:$0xf]
        %v635 = vld [vmem:[#allocation6 + $0x1fc] sm:$0xf]
        %v764 = vunpack.c.l.b16 %v380
        %v765 = vunpack.c.h.b16 %v380
        %v766 = vunpack.c.l.b16 %v381
        %v767 = vunpack.c.h.b16 %v381
        %v768 = vunpack.c.l.b16 %v382
        %v769 = vunpack.c.h.b16 %v382
        %v770 = vunpack.c.l.b16 %v383
        %v771 = vunpack.c.h.b16 %v383
        %v772 = vunpack.c.l.b16 %v384
        %v773 = vunpack.c.h.b16 %v384
        %v774 = vunpack.c.l.b16 %v385
        %v775 = vunpack.c.h.b16 %v385
        %v776 = vunpack.c.l.b16 %v386
        %v777 = vunpack.c.h.b16 %v386
        %v778 = vunpack.c.l.b16 %v387
        %v779 = vunpack.c.h.b16 %v387
        %v780 = vunpack.c.l.b16 %v388
        %v781 = vunpack.c.h.b16 %v388
        %v782 = vunpack.c.l.b16 %v389
        %v783 = vunpack.c.h.b16 %v389
        %v784 = vunpack.c.l.b16 %v390
        %v785 = vunpack.c.h.b16 %v390
        %v786 = vunpack.c.l.b16 %v391
        %v787 = vunpack.c.h.b16 %v391
        %v788 = vunpack.c.l.b16 %v392
        %v789 = vunpack.c.h.b16 %v392
        %v790 = vunpack.c.l.b16 %v393
        %v791 = vunpack.c.h.b16 %v393
        %v792 = vunpack.c.l.b16 %v394
        %v793 = vunpack.c.h.b16 %v394
        %v794 = vunpack.c.l.b16 %v395
        %v795 = vunpack.c.h.b16 %v395
        %v796 = vunpack.c.l.b16 %v396
        %v797 = vunpack.c.h.b16 %v396
        %v798 = vunpack.c.l.b16 %v397
        %v799 = vunpack.c.h.b16 %v397
        %v800 = vunpack.c.l.b16 %v398
        %v801 = vunpack.c.h.b16 %v398
        %v802 = vunpack.c.l.b16 %v399
        %v803 = vunpack.c.h.b16 %v399
        %v804 = vunpack.c.l.b16 %v400
        %v805 = vunpack.c.h.b16 %v400
        %v806 = vunpack.c.l.b16 %v401
        %v807 = vunpack.c.h.b16 %v401
        %v808 = vunpack.c.l.b16 %v402
        %v809 = vunpack.c.h.b16 %v402
        %v810 = vunpack.c.l.b16 %v403
        %v811 = vunpack.c.h.b16 %v403
        %v812 = vunpack.c.l.b16 %v404
        %v813 = vunpack.c.h.b16 %v404
        %v814 = vunpack.c.l.b16 %v405
        %v815 = vunpack.c.h.b16 %v405
        %v816 = vunpack.c.l.b16 %v406
        %v817 = vunpack.c.h.b16 %v406
        %v818 = vunpack.c.l.b16 %v407
        %v819 = vunpack.c.h.b16 %v407
        %v820 = vunpack.c.l.b16 %v408
        %v821 = vunpack.c.h.b16 %v408
        %v822 = vunpack.c.l.b16 %v409
        %v823 = vunpack.c.h.b16 %v409
        %v824 = vunpack.c.l.b16 %v410
        %v825 = vunpack.c.h.b16 %v410
        %v826 = vunpack.c.l.b16 %v411
        %v827 = vunpack.c.h.b16 %v411
        %v828 = vunpack.c.l.b16 %v412
        %v829 = vunpack.c.h.b16 %v412
        %v830 = vunpack.c.l.b16 %v413
        %v831 = vunpack.c.h.b16 %v413
        %v832 = vunpack.c.l.b16 %v414
        %v833 = vunpack.c.h.b16 %v414
        %v834 = vunpack.c.l.b16 %v415
        %v835 = vunpack.c.h.b16 %v415
        %v836 = vunpack.c.l.b16 %v416
        %v837 = vunpack.c.h.b16 %v416
        %v838 = vunpack.c.l.b16 %v417
        %v839 = vunpack.c.h.b16 %v417
        %v840 = vunpack.c.l.b16 %v418
        %v841 = vunpack.c.h.b16 %v418
        %v842 = vunpack.c.l.b16 %v419
        %v843 = vunpack.c.h.b16 %v419
        %v844 = vunpack.c.l.b16 %v420
        %v845 = vunpack.c.h.b16 %v420
        %v846 = vunpack.c.l.b16 %v421
        %v847 = vunpack.c.h.b16 %v421
        %v848 = vunpack.c.l.b16 %v422
        %v849 = vunpack.c.h.b16 %v422
        %v850 = vunpack.c.l.b16 %v423
        %v851 = vunpack.c.h.b16 %v423
        %v852 = vunpack.c.l.b16 %v424
        %v853 = vunpack.c.h.b16 %v424
        %v854 = vunpack.c.l.b16 %v425
        %v855 = vunpack.c.h.b16 %v425
        %v856 = vunpack.c.l.b16 %v426
        %v857 = vunpack.c.h.b16 %v426
        %v858 = vunpack.c.l.b16 %v427
        %v859 = vunpack.c.h.b16 %v427
        %v860 = vunpack.c.l.b16 %v428
        %v861 = vunpack.c.h.b16 %v428
        %v862 = vunpack.c.l.b16 %v429
        %v863 = vunpack.c.h.b16 %v429
        %v864 = vunpack.c.l.b16 %v430
        %v865 = vunpack.c.h.b16 %v430
        %v866 = vunpack.c.l.b16 %v431
        %v867 = vunpack.c.h.b16 %v431
        %v868 = vunpack.c.l.b16 %v432
        %v869 = vunpack.c.h.b16 %v432
        %v870 = vunpack.c.l.b16 %v433
        %v871 = vunpack.c.h.b16 %v433
        %v872 = vunpack.c.l.b16 %v434
        %v873 = vunpack.c.h.b16 %v434
        %v874 = vunpack.c.l.b16 %v435
        %v875 = vunpack.c.h.b16 %v435
        %v876 = vunpack.c.l.b16 %v436
        %v877 = vunpack.c.h.b16 %v436
        %v878 = vunpack.c.l.b16 %v437
        %v879 = vunpack.c.h.b16 %v437
        %v880 = vunpack.c.l.b16 %v438
        %v881 = vunpack.c.h.b16 %v438
        %v882 = vunpack.c.l.b16 %v439
        %v883 = vunpack.c.h.b16 %v439
        %v884 = vunpack.c.l.b16 %v440
        %v885 = vunpack.c.h.b16 %v440
        %v886 = vunpack.c.l.b16 %v441
        %v887 = vunpack.c.h.b16 %v441
        %v888 = vunpack.c.l.b16 %v442
        %v889 = vunpack.c.h.b16 %v442
        %v890 = vunpack.c.l.b16 %v443
        %v891 = vunpack.c.h.b16 %v443
        %v892 = vunpack.c.l.b16 %v444
        %v893 = vunpack.c.h.b16 %v444
        %v894 = vunpack.c.l.b16 %v445
        %v895 = vunpack.c.h.b16 %v445
        %v896 = vunpack.c.l.b16 %v446
        %v897 = vunpack.c.h.b16 %v446
        %v898 = vunpack.c.l.b16 %v447
        %v899 = vunpack.c.h.b16 %v447
        %v900 = vunpack.c.l.b16 %v448
        %v901 = vunpack.c.h.b16 %v448
        %v902 = vunpack.c.l.b16 %v449
        %v903 = vunpack.c.h.b16 %v449
        %v904 = vunpack.c.l.b16 %v450
        %v905 = vunpack.c.h.b16 %v450
        %v906 = vunpack.c.l.b16 %v451
        %v907 = vunpack.c.h.b16 %v451
        %v908 = vunpack.c.l.b16 %v452
        %v909 = vunpack.c.h.b16 %v452
        %v910 = vunpack.c.l.b16 %v453
        %v911 = vunpack.c.h.b16 %v453
        %v912 = vunpack.c.l.b16 %v454
        %v913 = vunpack.c.h.b16 %v454
        %v914 = vunpack.c.l.b16 %v455
        %v915 = vunpack.c.h.b16 %v455
        %v916 = vunpack.c.l.b16 %v456
        %v917 = vunpack.c.h.b16 %v456
        %v918 = vunpack.c.l.b16 %v457
        %v919 = vunpack.c.h.b16 %v457
        %v920 = vunpack.c.l.b16 %v458
        %v921 = vunpack.c.h.b16 %v458
        %v922 = vunpack.c.l.b16 %v459
        %v923 = vunpack.c.h.b16 %v459
        %v924 = vunpack.c.l.b16 %v460
        %v925 = vunpack.c.h.b16 %v460
        %v926 = vunpack.c.l.b16 %v461
        %v927 = vunpack.c.h.b16 %v461
        %v928 = vunpack.c.l.b16 %v462
        %v929 = vunpack.c.h.b16 %v462
        %v930 = vunpack.c.l.b16 %v463
        %v931 = vunpack.c.h.b16 %v463
        %v932 = vunpack.c.l.b16 %v464
        %v933 = vunpack.c.h.b16 %v464
        %v934 = vunpack.c.l.b16 %v465
        %v935 = vunpack.c.h.b16 %v465
        %v936 = vunpack.c.l.b16 %v466
        %v937 = vunpack.c.h.b16 %v466
        %v938 = vunpack.c.l.b16 %v467
        %v939 = vunpack.c.h.b16 %v467
        %v940 = vunpack.c.l.b16 %v468
        %v941 = vunpack.c.h.b16 %v468
        %v942 = vunpack.c.l.b16 %v469
        %v943 = vunpack.c.h.b16 %v469
        %v944 = vunpack.c.l.b16 %v470
        %v945 = vunpack.c.h.b16 %v470
        %v946 = vunpack.c.l.b16 %v471
        %v947 = vunpack.c.h.b16 %v471
        %v948 = vunpack.c.l.b16 %v472
        %v949 = vunpack.c.h.b16 %v472
        %v950 = vunpack.c.l.b16 %v473
        %v951 = vunpack.c.h.b16 %v473
        %v952 = vunpack.c.l.b16 %v474
        %v953 = vunpack.c.h.b16 %v474
        %v954 = vunpack.c.l.b16 %v475
        %v955 = vunpack.c.h.b16 %v475
        %v956 = vunpack.c.l.b16 %v476
        %v957 = vunpack.c.h.b16 %v476
        %v958 = vunpack.c.l.b16 %v477
        %v959 = vunpack.c.h.b16 %v477
        %v960 = vunpack.c.l.b16 %v478
        %v961 = vunpack.c.h.b16 %v478
        %v962 = vunpack.c.l.b16 %v479
        %v963 = vunpack.c.h.b16 %v479
        %v964 = vunpack.c.l.b16 %v480
        %v965 = vunpack.c.h.b16 %v480
        %v966 = vunpack.c.l.b16 %v481
        %v967 = vunpack.c.h.b16 %v481
        %v968 = vunpack.c.l.b16 %v482
        %v969 = vunpack.c.h.b16 %v482
        %v970 = vunpack.c.l.b16 %v483
        %v971 = vunpack.c.h.b16 %v483
        %v972 = vunpack.c.l.b16 %v484
        %v973 = vunpack.c.h.b16 %v484
        %v974 = vunpack.c.l.b16 %v485
        %v975 = vunpack.c.h.b16 %v485
        %v976 = vunpack.c.l.b16 %v486
        %v977 = vunpack.c.h.b16 %v486
        %v978 = vunpack.c.l.b16 %v487
        %v979 = vunpack.c.h.b16 %v487
        %v980 = vunpack.c.l.b16 %v488
        %v981 = vunpack.c.h.b16 %v488
        %v982 = vunpack.c.l.b16 %v489
        %v983 = vunpack.c.h.b16 %v489
        %v984 = vunpack.c.l.b16 %v490
        %v985 = vunpack.c.h.b16 %v490
        %v986 = vunpack.c.l.b16 %v491
        %v987 = vunpack.c.h.b16 %v491
        %v988 = vunpack.c.l.b16 %v492
        %v989 = vunpack.c.h.b16 %v492
        %v990 = vunpack.c.l.b16 %v493
        %v991 = vunpack.c.h.b16 %v493
        %v992 = vunpack.c.l.b16 %v494
        %v993 = vunpack.c.h.b16 %v494
        %v994 = vunpack.c.l.b16 %v495
        %v995 = vunpack.c.h.b16 %v495
        %v996 = vunpack.c.l.b16 %v496
        %v997 = vunpack.c.h.b16 %v496
        %v998 = vunpack.c.l.b16 %v497
        %v999 = vunpack.c.h.b16 %v497
        %v1000 = vunpack.c.l.b16 %v498
        %v1001 = vunpack.c.h.b16 %v498
        %v1002 = vunpack.c.l.b16 %v499
        %v1003 = vunpack.c.h.b16 %v499
        %v1004 = vunpack.c.l.b16 %v500
        %v1005 = vunpack.c.h.b16 %v500
        %v1006 = vunpack.c.l.b16 %v501
        %v1007 = vunpack.c.h.b16 %v501
        %v1008 = vunpack.c.l.b16 %v502
        %v1009 = vunpack.c.h.b16 %v502
        %v1010 = vunpack.c.l.b16 %v503
        %v1011 = vunpack.c.h.b16 %v503
        %v1012 = vunpack.c.l.b16 %v504
        %v1013 = vunpack.c.h.b16 %v504
        %v1014 = vunpack.c.l.b16 %v505
        %v1015 = vunpack.c.h.b16 %v505
        %v1016 = vunpack.c.l.b16 %v506
        %v1017 = vunpack.c.h.b16 %v506
        %v1018 = vunpack.c.l.b16 %v507
        %v1019 = vunpack.c.h.b16 %v507
        %v1020 = vpack.c.b16 %v772, %v764
        %v1021 = vpack.c.b16 %v773, %v765
        %v1022 = vpack.c.b16 %v774, %v766
        %v1023 = vpack.c.b16 %v775, %v767
        %v1024 = vpack.c.b16 %v776, %v768
        %v1025 = vpack.c.b16 %v777, %v769
        %v1026 = vpack.c.b16 %v778, %v770
        %v1027 = vpack.c.b16 %v779, %v771
        %v1028 = vpack.c.b16 %v788, %v780
        %v1029 = vpack.c.b16 %v789, %v781
        %v1030 = vpack.c.b16 %v790, %v782
        %v1031 = vpack.c.b16 %v791, %v783
        %v1032 = vpack.c.b16 %v792, %v784
        %v1033 = vpack.c.b16 %v793, %v785
        %v1034 = vpack.c.b16 %v794, %v786
        %v1035 = vpack.c.b16 %v795, %v787
        %v1036 = vpack.c.b16 %v804, %v796
        %v1037 = vpack.c.b16 %v805, %v797
        %v1038 = vpack.c.b16 %v806, %v798
        %v1039 = vpack.c.b16 %v807, %v799
        %v1040 = vpack.c.b16 %v808, %v800
        %v1041 = vpack.c.b16 %v809, %v801
        %v1042 = vpack.c.b16 %v810, %v802
        %v1043 = vpack.c.b16 %v811, %v803
        %v1044 = vpack.c.b16 %v820, %v812
        %v1045 = vpack.c.b16 %v821, %v813
        %v1046 = vpack.c.b16 %v822, %v814
        %v1047 = vpack.c.b16 %v823, %v815
        %v1048 = vpack.c.b16 %v824, %v816
        %v1049 = vpack.c.b16 %v825, %v817
        %v1050 = vpack.c.b16 %v826, %v818
        %v1051 = vpack.c.b16 %v827, %v819
        %v1052 = vpack.c.b16 %v836, %v828
        %v1053 = vpack.c.b16 %v837, %v829
        %v1054 = vpack.c.b16 %v838, %v830
        %v1055 = vpack.c.b16 %v839, %v831
        %v1056 = vpack.c.b16 %v840, %v832
        %v1057 = vpack.c.b16 %v841, %v833
        %v1058 = vpack.c.b16 %v842, %v834
        %v1059 = vpack.c.b16 %v843, %v835
        %v1060 = vpack.c.b16 %v852, %v844
        %v1061 = vpack.c.b16 %v853, %v845
        %v1062 = vpack.c.b16 %v854, %v846
        %v1063 = vpack.c.b16 %v855, %v847
        %v1064 = vpack.c.b16 %v856, %v848
        %v1065 = vpack.c.b16 %v857, %v849
        %v1066 = vpack.c.b16 %v858, %v850
        %v1067 = vpack.c.b16 %v859, %v851
        %v1068 = vpack.c.b16 %v868, %v860
        %v1069 = vpack.c.b16 %v869, %v861
        %v1070 = vpack.c.b16 %v870, %v862
        %v1071 = vpack.c.b16 %v871, %v863
        %v1072 = vpack.c.b16 %v872, %v864
        %v1073 = vpack.c.b16 %v873, %v865
        %v1074 = vpack.c.b16 %v874, %v866
        %v1075 = vpack.c.b16 %v875, %v867
        %v1076 = vpack.c.b16 %v884, %v876
        %v1077 = vpack.c.b16 %v885, %v877
        %v1078 = vpack.c.b16 %v886, %v878
        %v1079 = vpack.c.b16 %v887, %v879
        %v1080 = vpack.c.b16 %v888, %v880
        %v1081 = vpack.c.b16 %v889, %v881
        %v1082 = vpack.c.b16 %v890, %v882
        %v1083 = vpack.c.b16 %v891, %v883
        %v1084 = vpack.c.b16 %v900, %v892
        %v1085 = vpack.c.b16 %v901, %v893
        %v1086 = vpack.c.b16 %v902, %v894
        %v1087 = vpack.c.b16 %v903, %v895
        %v1088 = vpack.c.b16 %v904, %v896
        %v1089 = vpack.c.b16 %v905, %v897
        %v1090 = vpack.c.b16 %v906, %v898
        %v1091 = vpack.c.b16 %v907, %v899
        %v1092 = vpack.c.b16 %v916, %v908
        %v1093 = vpack.c.b16 %v917, %v909
        %v1094 = vpack.c.b16 %v918, %v910
        %v1095 = vpack.c.b16 %v919, %v911
        %v1096 = vpack.c.b16 %v920, %v912
        %v1097 = vpack.c.b16 %v921, %v913
        %v1098 = vpack.c.b16 %v922, %v914
        %v1099 = vpack.c.b16 %v923, %v915
        %v1100 = vpack.c.b16 %v932, %v924
        %v1101 = vpack.c.b16 %v933, %v925
        %v1102 = vpack.c.b16 %v934, %v926
        %v1103 = vpack.c.b16 %v935, %v927
        %v1104 = vpack.c.b16 %v936, %v928
        %v1105 = vpack.c.b16 %v937, %v929
        %v1106 = vpack.c.b16 %v938, %v930
        %v1107 = vpack.c.b16 %v939, %v931
        %v1108 = vpack.c.b16 %v948, %v940
        %v1109 = vpack.c.b16 %v949, %v941
        %v1110 = vpack.c.b16 %v950, %v942
        %v1111 = vpack.c.b16 %v951, %v943
        %v1112 = vpack.c.b16 %v952, %v944
        %v1113 = vpack.c.b16 %v953, %v945
        %v1114 = vpack.c.b16 %v954, %v946
        %v1115 = vpack.c.b16 %v955, %v947
        %v1116 = vpack.c.b16 %v964, %v956
        %v1117 = vpack.c.b16 %v965, %v957
        %v1118 = vpack.c.b16 %v966, %v958
        %v1119 = vpack.c.b16 %v967, %v959
        %v1120 = vpack.c.b16 %v968, %v960
        %v1121 = vpack.c.b16 %v969, %v961
        %v1122 = vpack.c.b16 %v970, %v962
        %v1123 = vpack.c.b16 %v971, %v963
        %v1124 = vpack.c.b16 %v980, %v972
        %v1125 = vpack.c.b16 %v981, %v973
        %v1126 = vpack.c.b16 %v982, %v974
        %v1127 = vpack.c.b16 %v983, %v975
        %v1128 = vpack.c.b16 %v984, %v976
        %v1129 = vpack.c.b16 %v985, %v977
        %v1130 = vpack.c.b16 %v986, %v978
        %v1131 = vpack.c.b16 %v987, %v979
        %v1132 = vpack.c.b16 %v996, %v988
        %v1133 = vpack.c.b16 %v997, %v989
        %v1134 = vpack.c.b16 %v998, %v990
        %v1135 = vpack.c.b16 %v999, %v991
        %v1136 = vpack.c.b16 %v1000, %v992
        %v1137 = vpack.c.b16 %v1001, %v993
        %v1138 = vpack.c.b16 %v1002, %v994
        %v1139 = vpack.c.b16 %v1003, %v995
        %v1140 = vpack.c.b16 %v1012, %v1004
        %v1141 = vpack.c.b16 %v1013, %v1005
        %v1142 = vpack.c.b16 %v1014, %v1006
        %v1143 = vpack.c.b16 %v1015, %v1007
        %v1144 = vpack.c.b16 %v1016, %v1008
        %v1145 = vpack.c.b16 %v1017, %v1009
        %v1146 = vpack.c.b16 %v1018, %v1010
        %v1147 = vpack.c.b16 %v1019, %v1011
        %v1404 = vunpack.c.l.b16 %v508
        %v1405 = vunpack.c.l.b16 %v509
        %v1406 = vunpack.c.l.b16 %v510
        %v1407 = vunpack.c.l.b16 %v511
        %v1408 = vunpack.c.l.b16 %v512
        %v1409 = vunpack.c.l.b16 %v513
        %v1410 = vunpack.c.l.b16 %v514
        %v1411 = vunpack.c.l.b16 %v515
        %v1412 = vunpack.c.l.b16 %v516
        %v1413 = vunpack.c.l.b16 %v517
        %v1414 = vunpack.c.l.b16 %v518
        %v1415 = vunpack.c.l.b16 %v519
        %v1416 = vunpack.c.l.b16 %v520
        %v1417 = vunpack.c.l.b16 %v521
        %v1418 = vunpack.c.l.b16 %v522
        %v1419 = vunpack.c.l.b16 %v523
        %v1420 = vunpack.c.l.b16 %v524
        %v1421 = vunpack.c.l.b16 %v525
        %v1422 = vunpack.c.l.b16 %v526
        %v1423 = vunpack.c.l.b16 %v527
        %v1424 = vunpack.c.l.b16 %v528
        %v1425 = vunpack.c.l.b16 %v529
        %v1426 = vunpack.c.l.b16 %v530
        %v1427 = vunpack.c.l.b16 %v531
        %v1428 = vunpack.c.l.b16 %v532
        %v1429 = vunpack.c.l.b16 %v533
        %v1430 = vunpack.c.l.b16 %v534
        %v1431 = vunpack.c.l.b16 %v535
        %v1432 = vunpack.c.l.b16 %v536
        %v1433 = vunpack.c.l.b16 %v537
        %v1434 = vunpack.c.l.b16 %v538
        %v1435 = vunpack.c.l.b16 %v539
        %v1436 = vunpack.c.l.b16 %v540
        %v1437 = vunpack.c.l.b16 %v541
        %v1438 = vunpack.c.l.b16 %v542
        %v1439 = vunpack.c.l.b16 %v543
        %v1440 = vunpack.c.l.b16 %v544
        %v1441 = vunpack.c.l.b16 %v545
        %v1442 = vunpack.c.l.b16 %v546
        %v1443 = vunpack.c.l.b16 %v547
        %v1444 = vunpack.c.l.b16 %v548
        %v1445 = vunpack.c.l.b16 %v549
        %v1446 = vunpack.c.l.b16 %v550
        %v1447 = vunpack.c.l.b16 %v551
        %v1448 = vunpack.c.l.b16 %v552
        %v1449 = vunpack.c.l.b16 %v553
        %v1450 = vunpack.c.l.b16 %v554
        %v1451 = vunpack.c.l.b16 %v555
        %v1452 = vunpack.c.l.b16 %v556
        %v1453 = vunpack.c.l.b16 %v557
        %v1454 = vunpack.c.l.b16 %v558
        %v1455 = vunpack.c.l.b16 %v559
        %v1456 = vunpack.c.l.b16 %v560
        %v1457 = vunpack.c.l.b16 %v561
        %v1458 = vunpack.c.l.b16 %v562
        %v1459 = vunpack.c.l.b16 %v563
        %v1460 = vunpack.c.l.b16 %v564
        %v1461 = vunpack.c.l.b16 %v565
        %v1462 = vunpack.c.l.b16 %v566
        %v1463 = vunpack.c.l.b16 %v567
        %v1464 = vunpack.c.l.b16 %v568
        %v1465 = vunpack.c.l.b16 %v569
        %v1466 = vunpack.c.l.b16 %v570
        %v1467 = vunpack.c.l.b16 %v571
        %v1468 = vunpack.c.l.b16 %v572
        %v1469 = vunpack.c.l.b16 %v573
        %v1470 = vunpack.c.l.b16 %v574
        %v1471 = vunpack.c.l.b16 %v575
        %v1472 = vunpack.c.l.b16 %v576
        %v1473 = vunpack.c.l.b16 %v577
        %v1474 = vunpack.c.l.b16 %v578
        %v1475 = vunpack.c.l.b16 %v579
        %v1476 = vunpack.c.l.b16 %v580
        %v1477 = vunpack.c.l.b16 %v581
        %v1478 = vunpack.c.l.b16 %v582
        %v1479 = vunpack.c.l.b16 %v583
        %v1480 = vunpack.c.l.b16 %v584
        %v1481 = vunpack.c.l.b16 %v585
        %v1482 = vunpack.c.l.b16 %v586
        %v1483 = vunpack.c.l.b16 %v587
        %v1484 = vunpack.c.l.b16 %v588
        %v1485 = vunpack.c.l.b16 %v589
        %v1486 = vunpack.c.l.b16 %v590
        %v1487 = vunpack.c.l.b16 %v591
        %v1488 = vunpack.c.l.b16 %v592
        %v1489 = vunpack.c.l.b16 %v593
        %v1490 = vunpack.c.l.b16 %v594
        %v1491 = vunpack.c.l.b16 %v595
        %v1492 = vunpack.c.l.b16 %v596
        %v1493 = vunpack.c.l.b16 %v597
        %v1494 = vunpack.c.l.b16 %v598
        %v1495 = vunpack.c.l.b16 %v599
        %v1496 = vunpack.c.l.b16 %v600
        %v1497 = vunpack.c.l.b16 %v601
        %v1498 = vunpack.c.l.b16 %v602
        %v1499 = vunpack.c.l.b16 %v603
        %v1500 = vunpack.c.l.b16 %v604
        %v1501 = vunpack.c.l.b16 %v605
        %v1502 = vunpack.c.l.b16 %v606
        %v1503 = vunpack.c.l.b16 %v607
        %v1504 = vunpack.c.l.b16 %v608
        %v1505 = vunpack.c.l.b16 %v609
        %v1506 = vunpack.c.l.b16 %v610
        %v1507 = vunpack.c.l.b16 %v611
        %v1508 = vunpack.c.l.b16 %v612
        %v1509 = vunpack.c.l.b16 %v613
        %v1510 = vunpack.c.l.b16 %v614
        %v1511 = vunpack.c.l.b16 %v615
        %v1512 = vunpack.c.l.b16 %v616
        %v1513 = vunpack.c.l.b16 %v617
        %v1514 = vunpack.c.l.b16 %v618
        %v1515 = vunpack.c.l.b16 %v619
        %v1516 = vunpack.c.l.b16 %v620
        %v1517 = vunpack.c.l.b16 %v621
        %v1518 = vunpack.c.l.b16 %v622
        %v1519 = vunpack.c.l.b16 %v623
        %v1520 = vunpack.c.l.b16 %v624
        %v1521 = vunpack.c.l.b16 %v625
        %v1522 = vunpack.c.l.b16 %v626
        %v1523 = vunpack.c.l.b16 %v627
        %v1524 = vunpack.c.l.b16 %v628
        %v1525 = vunpack.c.l.b16 %v629
        %v1526 = vunpack.c.l.b16 %v630
        %v1527 = vunpack.c.l.b16 %v631
        %v1528 = vunpack.c.l.b16 %v632
        %v1529 = vunpack.c.l.b16 %v633
        %v1530 = vunpack.c.l.b16 %v634
        %v1531 = vunpack.c.l.b16 %v635
        %v1532 = vpack.c.b16 %v1405, %v1404
        %v1533 = vpack.c.b16 %v1407, %v1406
        %v1534 = vpack.c.b16 %v1409, %v1408
        %v1535 = vpack.c.b16 %v1411, %v1410
        %v1536 = vpack.c.b16 %v1413, %v1412
        %v1537 = vpack.c.b16 %v1415, %v1414
        %v1538 = vpack.c.b16 %v1417, %v1416
        %v1539 = vpack.c.b16 %v1419, %v1418
        %v1540 = vpack.c.b16 %v1421, %v1420
        %v1541 = vpack.c.b16 %v1423, %v1422
        %v1542 = vpack.c.b16 %v1425, %v1424
        %v1543 = vpack.c.b16 %v1427, %v1426
        %v1544 = vpack.c.b16 %v1429, %v1428
        %v1545 = vpack.c.b16 %v1431, %v1430
        %v1546 = vpack.c.b16 %v1433, %v1432
        %v1547 = vpack.c.b16 %v1435, %v1434
        %v1548 = vpack.c.b16 %v1437, %v1436
        %v1549 = vpack.c.b16 %v1439, %v1438
        %v1550 = vpack.c.b16 %v1441, %v1440
        %v1551 = vpack.c.b16 %v1443, %v1442
        %v1552 = vpack.c.b16 %v1445, %v1444
        %v1553 = vpack.c.b16 %v1447, %v1446
        %v1554 = vpack.c.b16 %v1449, %v1448
        %v1555 = vpack.c.b16 %v1451, %v1450
        %v1556 = vpack.c.b16 %v1453, %v1452
        %v1557 = vpack.c.b16 %v1455, %v1454
        %v1558 = vpack.c.b16 %v1457, %v1456
        %v1559 = vpack.c.b16 %v1459, %v1458
        %v1560 = vpack.c.b16 %v1461, %v1460
        %v1561 = vpack.c.b16 %v1463, %v1462
        %v1562 = vpack.c.b16 %v1465, %v1464
        %v1563 = vpack.c.b16 %v1467, %v1466
        %v1564 = vpack.c.b16 %v1469, %v1468
        %v1565 = vpack.c.b16 %v1471, %v1470
        %v1566 = vpack.c.b16 %v1473, %v1472
        %v1567 = vpack.c.b16 %v1475, %v1474
        %v1568 = vpack.c.b16 %v1477, %v1476
        %v1569 = vpack.c.b16 %v1479, %v1478
        %v1570 = vpack.c.b16 %v1481, %v1480
        %v1571 = vpack.c.b16 %v1483, %v1482
        %v1572 = vpack.c.b16 %v1485, %v1484
        %v1573 = vpack.c.b16 %v1487, %v1486
        %v1574 = vpack.c.b16 %v1489, %v1488
        %v1575 = vpack.c.b16 %v1491, %v1490
        %v1576 = vpack.c.b16 %v1493, %v1492
        %v1577 = vpack.c.b16 %v1495, %v1494
        %v1578 = vpack.c.b16 %v1497, %v1496
        %v1579 = vpack.c.b16 %v1499, %v1498
        %v1580 = vpack.c.b16 %v1501, %v1500
        %v1581 = vpack.c.b16 %v1503, %v1502
        %v1582 = vpack.c.b16 %v1505, %v1504
        %v1583 = vpack.c.b16 %v1507, %v1506
        %v1584 = vpack.c.b16 %v1509, %v1508
        %v1585 = vpack.c.b16 %v1511, %v1510
        %v1586 = vpack.c.b16 %v1513, %v1512
        %v1587 = vpack.c.b16 %v1515, %v1514
        %v1588 = vpack.c.b16 %v1517, %v1516
        %v1589 = vpack.c.b16 %v1519, %v1518
        %v1590 = vpack.c.b16 %v1521, %v1520
        %v1591 = vpack.c.b16 %v1523, %v1522
        %v1592 = vpack.c.b16 %v1525, %v1524
        %v1593 = vpack.c.b16 %v1527, %v1526
        %v1594 = vpack.c.b16 %v1529, %v1528
        %v1595 = vpack.c.b16 %v1531, %v1530
        %1660 = vmatprep.subr.bf16.mxu0 0
        %1661 = vmatpush1.bf16.msra.mxu0 %v1532
        %1662 = vmatprep.subr.bf16.mxu0 0
        %1663 = vmatpush1.bf16.msra.mxu0 %v1533
        %1664 = vmatprep.subr.bf16.mxu0 0
        %1665 = vmatpush1.bf16.msra.mxu0 %v1534
        %1666 = vmatprep.subr.bf16.mxu0 0
        %1667 = vmatpush1.bf16.msra.mxu0 %v1535
        %1668 = vmatprep.subr.bf16.mxu0 0
        %1669 = vmatpush1.bf16.msra.mxu0 %v1536
        %1670 = vmatprep.subr.bf16.mxu0 0
        %1671 = vmatpush1.bf16.msra.mxu0 %v1537
        %1672 = vmatprep.subr.bf16.mxu0 0
        %1673 = vmatpush1.bf16.msra.mxu0 %v1538
        %1674 = vmatprep.subr.bf16.mxu0 0
        %1675 = vmatpush1.bf16.msra.mxu0 %v1539
        %1676 = vmatprep.subr.bf16.mxu0 0
        %1677 = vmatpush1.bf16.msra.mxu0 %v1540
        %1678 = vmatprep.subr.bf16.mxu0 0
        %1679 = vmatpush1.bf16.msra.mxu0 %v1541
        %1680 = vmatprep.subr.bf16.mxu0 0
        %1681 = vmatpush1.bf16.msra.mxu0 %v1542
        %1682 = vmatprep.subr.bf16.mxu0 0
        %1683 = vmatpush1.bf16.msra.mxu0 %v1543
        %1684 = vmatprep.subr.bf16.mxu0 0
        %1685 = vmatpush1.bf16.msra.mxu0 %v1544
        %1686 = vmatprep.subr.bf16.mxu0 0
        %1687 = vmatpush1.bf16.msra.mxu0 %v1545
        %1688 = vmatprep.subr.bf16.mxu0 0
        %1689 = vmatpush1.bf16.msra.mxu0 %v1546
        %1690 = vmatprep.subr.bf16.mxu0 0
        %1691 = vmatpush1.bf16.msra.mxu0 %v1547
        %1692 = vmatprep.mubr.bf16.mxu0 %v1021
        %1693 = vmatmul.mubr.bf16.gmra.mrb[0].mxu0 %v1020
        %v1694 = vpop.f32.mrb[0].mxu0
        %v1695 = vadd.f32 0.0, %v1694
        %v1696 = vpop.f32.mrb[0].mxu0
        %v1697 = vpop.f32.mrb[0].mxu0
        %v1698 = vadd.f32 0.0, %v1697
        %v1699 = vpop.f32.mrb[0].mxu0
        %1700 = vmatprep.mubr.bf16.mxu0 %v1029
        %1701 = vmatmul.mubr.bf16.gmra.mrb[0].mxu0 %v1028
        %v1702 = vpop.f32.mrb[0].mxu0
        %v1703 = vadd.f32 0.0, %v1702
        %v1704 = vpop.f32.mrb[0].mxu0
        %v1705 = vpop.f32.mrb[0].mxu0
        %v1706 = vadd.f32 0.0, %v1705
        %v1707 = vpop.f32.mrb[0].mxu0
        %1708 = vmatprep.mubr.bf16.mxu0 %v1037
        %1709 = vmatmul.mubr.bf16.gmra.mrb[0].mxu0 %v1036
        %v1710 = vpop.f32.mrb[0].mxu0
        %v1711 = vadd.f32 0.0, %v1710
        %v1712 = vpop.f32.mrb[0].mxu0
        %v1713 = vpop.f32.mrb[0].mxu0
        %v1714 = vadd.f32 0.0, %v1713
        %v1715 = vpop.f32.mrb[0].mxu0
        %1716 = vmatprep.mubr.bf16.mxu0 %v1045
        %1717 = vmatmul.mubr.bf16.gmra.mrb[0].mxu0 %v1044
        %v1718 = vpop.f32.mrb[0].mxu0
        %v1719 = vadd.f32 0.0, %v1718
        %v1720 = vpop.f32.mrb[0].mxu0
        %v1721 = vpop.f32.mrb[0].mxu0
        %v1722 = vadd.f32 0.0, %v1721
        %v1723 = vpop.f32.mrb[0].mxu0
        %1724 = vmatprep.mubr.bf16.mxu0 %v1053
        %1725 = vmatmul.mubr.bf16.gmra.mrb[0].mxu0 %v1052
        %v1726 = vpop.f32.mrb[0].mxu0
        %v1727 = vadd.f32 0.0, %v1726
        %v1728 = vpop.f32.mrb[0].mxu0
        %v1729 = vpop.f32.mrb[0].mxu0
        %v1730 = vadd.f32 0.0, %v1729
        %v1731 = vpop.f32.mrb[0].mxu0
        %1732 = vmatprep.mubr.bf16.mxu0 %v1061
        %1733 = vmatmul.mubr.bf16.gmra.mrb[0].mxu0 %v1060
        %v1734 = vpop.f32.mrb[0].mxu0
        %v1735 = vadd.f32 0.0, %v1734
        %v1736 = vpop.f32.mrb[0].mxu0
        %v1737 = vpop.f32.mrb[0].mxu0
        %v1738 = vadd.f32 0.0, %v1737
        %v1739 = vpop.f32.mrb[0].mxu0
        %1740 = vmatprep.mubr.bf16.mxu0 %v1069
        %1741 = vmatmul.mubr.bf16.gmra.mrb[0].mxu0 %v1068
        %v1742 = vpop.f32.mrb[0].mxu0
        %v1743 = vadd.f32 0.0, %v1742
        %v1744 = vpop.f32.mrb[0].mxu0
        %v1745 = vpop.f32.mrb[0].mxu0
        %v1746 = vadd.f32 0.0, %v1745
        %v1747 = vpop.f32.mrb[0].mxu0
        %1748 = vmatprep.mubr.bf16.mxu0 %v1077
        %1749 = vmatmul.mubr.bf16.gmra.mrb[0].mxu0 %v1076
        %v1750 = vpop.f32.mrb[0].mxu0
        %v1751 = vadd.f32 0.0, %v1750
        %v1752 = vpop.f32.mrb[0].mxu0
        %v1753 = vpop.f32.mrb[0].mxu0
        %v1754 = vadd.f32 0.0, %v1753
        %v1755 = vpop.f32.mrb[0].mxu0
        %1756 = vmatprep.mubr.bf16.mxu0 %v1085
        %1757 = vmatmul.mubr.bf16.gmra.mrb[0].mxu0 %v1084
        %v1758 = vpop.f32.mrb[0].mxu0
        %v1759 = vadd.f32 0.0, %v1758
        %v1760 = vpop.f32.mrb[0].mxu0
        %v1761 = vpop.f32.mrb[0].mxu0
        %v1762 = vadd.f32 0.0, %v1761
        %v1763 = vpop.f32.mrb[0].mxu0
        %1764 = vmatprep.mubr.bf16.mxu0 %v1093
        %1765 = vmatmul.mubr.bf16.gmra.mrb[0].mxu0 %v1092
        %v1766 = vpop.f32.mrb[0].mxu0
        %v1767 = vadd.f32 0.0, %v1766
        %v1768 = vpop.f32.mrb[0].mxu0
        %v1769 = vpop.f32.mrb[0].mxu0
        %v1770 = vadd.f32 0.0, %v1769
        %v1771 = vpop.f32.mrb[0].mxu0
        %1772 = vmatprep.mubr.bf16.mxu0 %v1101
        %1773 = vmatmul.mubr.bf16.gmra.mrb[0].mxu0 %v1100
        %v1774 = vpop.f32.mrb[0].mxu0
        %v1775 = vadd.f32 0.0, %v1774
        %v1776 = vpop.f32.mrb[0].mxu0
        %v1777 = vpop.f32.mrb[0].mxu0
        %v1778 = vadd.f32 0.0, %v1777
        %v1779 = vpop.f32.mrb[0].mxu0
        %1780 = vmatprep.mubr.bf16.mxu0 %v1109
        %1781 = vmatmul.mubr.bf16.gmra.mrb[0].mxu0 %v1108
        %v1782 = vpop.f32.mrb[0].mxu0
        %v1783 = vadd.f32 0.0, %v1782
        %v1784 = vpop.f32.mrb[0].mxu0
        %v1785 = vpop.f32.mrb[0].mxu0
        %v1786 = vadd.f32 0.0, %v1785
        %v1787 = vpop.f32.mrb[0].mxu0
        %1788 = vmatprep.mubr.bf16.mxu0 %v1117
        %1789 = vmatmul.mubr.bf16.gmra.mrb[0].mxu0 %v1116
        %v1790 = vpop.f32.mrb[0].mxu0
        %v1791 = vadd.f32 0.0, %v1790
        %v1792 = vpop.f32.mrb[0].mxu0
        %v1793 = vpop.f32.mrb[0].mxu0
        %v1794 = vadd.f32 0.0, %v1793
        %v1795 = vpop.f32.mrb[0].mxu0
        %1796 = vmatprep.mubr.bf16.mxu0 %v1125
        %1797 = vmatmul.mubr.bf16.gmra.mrb[0].mxu0 %v1124
        %v1798 = vpop.f32.mrb[0].mxu0
        %v1799 = vadd.f32 0.0, %v1798
        %v1800 = vpop.f32.mrb[0].mxu0
        %v1801 = vpop.f32.mrb[0].mxu0
        %v1802 = vadd.f32 0.0, %v1801
        %v1803 = vpop.f32.mrb[0].mxu0
        %1804 = vmatprep.mubr.bf16.mxu0 %v1133
        %1805 = vmatmul.mubr.bf16.gmra.mrb[0].mxu0 %v1132
        %v1806 = vpop.f32.mrb[0].mxu0
        %v1807 = vadd.f32 0.0, %v1806
        %v1808 = vpop.f32.mrb[0].mxu0
        %v1809 = vpop.f32.mrb[0].mxu0
        %v1810 = vadd.f32 0.0, %v1809
        %v1811 = vpop.f32.mrb[0].mxu0
        %1812 = vmatprep.mubr.bf16.mxu0 %v1141
        %1813 = vmatmul.mubr.bf16.gmra.mrb[0].mxu0 %v1140
        %v1814 = vpop.f32.mrb[0].mxu0
        %v1815 = vadd.f32 0.0, %v1814
        %v1816 = vpop.f32.mrb[0].mxu0
        %v1817 = vpop.f32.mrb[0].mxu0
        %v1818 = vadd.f32 0.0, %v1817
        %v1819 = vpop.f32.mrb[0].mxu0
        %1820 = vdwg.mxu0
        %1821 = vmatprep.subr.bf16.mxu0 0
        %1822 = vmatpush1.bf16.msra.mxu0 %v1548
        %1823 = vmatprep.subr.bf16.mxu0 0
        %1824 = vmatpush1.bf16.msra.mxu0 %v1549
        %1825 = vmatprep.subr.bf16.mxu0 0
        %1826 = vmatpush1.bf16.msra.mxu0 %v1550
        %1827 = vmatprep.subr.bf16.mxu0 0
        %1828 = vmatpush1.bf16.msra.mxu0 %v1551
        %1829 = vmatprep.subr.bf16.mxu0 0
        %1830 = vmatpush1.bf16.msra.mxu0 %v1552
        %1831 = vmatprep.subr.bf16.mxu0 0
        %1832 = vmatpush1.bf16.msra.mxu0 %v1553
        %1833 = vmatprep.subr.bf16.mxu0 0
        %1834 = vmatpush1.bf16.msra.mxu0 %v1554
        %1835 = vmatprep.subr.bf16.mxu0 0
        %1836 = vmatpush1.bf16.msra.mxu0 %v1555
        %1837 = vmatprep.subr.bf16.mxu0 0
        %1838 = vmatpush1.bf16.msra.mxu0 %v1556
        %1839 = vmatprep.subr.bf16.mxu0 0
        %1840 = vmatpush1.bf16.msra.mxu0 %v1557
        %1841 = vmatprep.subr.bf16.mxu0 0
        %1842 = vmatpush1.bf16.msra.mxu0 %v1558
        %1843 = vmatprep.subr.bf16.mxu0 0
        %1844 = vmatpush1.bf16.msra.mxu0 %v1559
        %1845 = vmatprep.subr.bf16.mxu0 0
        %1846 = vmatpush1.bf16.msra.mxu0 %v1560
        %1847 = vmatprep.subr.bf16.mxu0 0
        %1848 = vmatpush1.bf16.msra.mxu0 %v1561
        %1849 = vmatprep.subr.bf16.mxu0 0
        %1850 = vmatpush1.bf16.msra.mxu0 %v1562
        %1851 = vmatprep.subr.bf16.mxu0 0
        %1852 = vmatpush1.bf16.msra.mxu0 %v1563
        %1853 = vmatprep.mubr.bf16.mxu0 %v1023
        %1854 = vmatmul.mubr.bf16.gmra.mrb[0].mxu0 %v1022
        %v1855 = vpop.f32.mrb[0].mxu0
        %v1856 = vadd.f32 %v1695, %v1855
        %v1857 = vpop.f32.mrb[0].mxu0
        %v1858 = vpop.f32.mrb[0].mxu0
        %v1859 = vadd.f32 %v1698, %v1858
        %v1860 = vpop.f32.mrb[0].mxu0
        %1861 = vmatprep.mubr.bf16.mxu0 %v1031
        %1862 = vmatmul.mubr.bf16.gmra.mrb[0].mxu0 %v1030
        %v1863 = vpop.f32.mrb[0].mxu0
        %v1864 = vadd.f32 %v1703, %v1863
        %v1865 = vpop.f32.mrb[0].mxu0
        %v1866 = vpop.f32.mrb[0].mxu0
        %v1867 = vadd.f32 %v1706, %v1866
        %v1868 = vpop.f32.mrb[0].mxu0
        %1869 = vmatprep.mubr.bf16.mxu0 %v1039
        %1870 = vmatmul.mubr.bf16.gmra.mrb[0].mxu0 %v1038
        %v1871 = vpop.f32.mrb[0].mxu0
        %v1872 = vadd.f32 %v1711, %v1871
        %v1873 = vpop.f32.mrb[0].mxu0
        %v1874 = vpop.f32.mrb[0].mxu0
        %v1875 = vadd.f32 %v1714, %v1874
        %v1876 = vpop.f32.mrb[0].mxu0
        %1877 = vmatprep.mubr.bf16.mxu0 %v1047
        %1878 = vmatmul.mubr.bf16.gmra.mrb[0].mxu0 %v1046
        %v1879 = vpop.f32.mrb[0].mxu0
        %v1880 = vadd.f32 %v1719, %v1879
        %v1881 = vpop.f32.mrb[0].mxu0
        %v1882 = vpop.f32.mrb[0].mxu0
        %v1883 = vadd.f32 %v1722, %v1882
        %v1884 = vpop.f32.mrb[0].mxu0
        %1885 = vmatprep.mubr.bf16.mxu0 %v1055
        %1886 = vmatmul.mubr.bf16.gmra.mrb[0].mxu0 %v1054
        %v1887 = vpop.f32.mrb[0].mxu0
        %v1888 = vadd.f32 %v1727, %v1887
        %v1889 = vpop.f32.mrb[0].mxu0
        %v1890 = vpop.f32.mrb[0].mxu0
        %v1891 = vadd.f32 %v1730, %v1890
        %v1892 = vpop.f32.mrb[0].mxu0
        %1893 = vmatprep.mubr.bf16.mxu0 %v1063
        %1894 = vmatmul.mubr.bf16.gmra.mrb[0].mxu0 %v1062
        %v1895 = vpop.f32.mrb[0].mxu0
        %v1896 = vadd.f32 %v1735, %v1895
        %v1897 = vpop.f32.mrb[0].mxu0
        %v1898 = vpop.f32.mrb[0].mxu0
        %v1899 = vadd.f32 %v1738, %v1898
        %v1900 = vpop.f32.mrb[0].mxu0
        %1901 = vmatprep.mubr.bf16.mxu0 %v1071
        %1902 = vmatmul.mubr.bf16.gmra.mrb[0].mxu0 %v1070
        %v1903 = vpop.f32.mrb[0].mxu0
        %v1904 = vadd.f32 %v1743, %v1903
        %v1905 = vpop.f32.mrb[0].mxu0
        %v1906 = vpop.f32.mrb[0].mxu0
        %v1907 = vadd.f32 %v1746, %v1906
        %v1908 = vpop.f32.mrb[0].mxu0
        %1909 = vmatprep.mubr.bf16.mxu0 %v1079
        %1910 = vmatmul.mubr.bf16.gmra.mrb[0].mxu0 %v1078
        %v1911 = vpop.f32.mrb[0].mxu0
        %v1912 = vadd.f32 %v1751, %v1911
        %v1913 = vpop.f32.mrb[0].mxu0
        %v1914 = vpop.f32.mrb[0].mxu0
        %v1915 = vadd.f32 %v1754, %v1914
        %v1916 = vpop.f32.mrb[0].mxu0
        %1917 = vmatprep.mubr.bf16.mxu0 %v1087
        %1918 = vmatmul.mubr.bf16.gmra.mrb[0].mxu0 %v1086
        %v1919 = vpop.f32.mrb[0].mxu0
        %v1920 = vadd.f32 %v1759, %v1919
        %v1921 = vpop.f32.mrb[0].mxu0
        %v1922 = vpop.f32.mrb[0].mxu0
        %v1923 = vadd.f32 %v1762, %v1922
        %v1924 = vpop.f32.mrb[0].mxu0
        %1925 = vmatprep.mubr.bf16.mxu0 %v1095
        %1926 = vmatmul.mubr.bf16.gmra.mrb[0].mxu0 %v1094
        %v1927 = vpop.f32.mrb[0].mxu0
        %v1928 = vadd.f32 %v1767, %v1927
        %v1929 = vpop.f32.mrb[0].mxu0
        %v1930 = vpop.f32.mrb[0].mxu0
        %v1931 = vadd.f32 %v1770, %v1930
        %v1932 = vpop.f32.mrb[0].mxu0
        %1933 = vmatprep.mubr.bf16.mxu0 %v1103
        %1934 = vmatmul.mubr.bf16.gmra.mrb[0].mxu0 %v1102
        %v1935 = vpop.f32.mrb[0].mxu0
        %v1936 = vadd.f32 %v1775, %v1935
        %v1937 = vpop.f32.mrb[0].mxu0
        %v1938 = vpop.f32.mrb[0].mxu0
        %v1939 = vadd.f32 %v1778, %v1938
        %v1940 = vpop.f32.mrb[0].mxu0
        %1941 = vmatprep.mubr.bf16.mxu0 %v1111
        %1942 = vmatmul.mubr.bf16.gmra.mrb[0].mxu0 %v1110
        %v1943 = vpop.f32.mrb[0].mxu0
        %v1944 = vadd.f32 %v1783, %v1943
        %v1945 = vpop.f32.mrb[0].mxu0
        %v1946 = vpop.f32.mrb[0].mxu0
        %v1947 = vadd.f32 %v1786, %v1946
        %v1948 = vpop.f32.mrb[0].mxu0
        %1949 = vmatprep.mubr.bf16.mxu0 %v1119
        %1950 = vmatmul.mubr.bf16.gmra.mrb[0].mxu0 %v1118
        %v1951 = vpop.f32.mrb[0].mxu0
        %v1952 = vadd.f32 %v1791, %v1951
        %v1953 = vpop.f32.mrb[0].mxu0
        %v1954 = vpop.f32.mrb[0].mxu0
        %v1955 = vadd.f32 %v1794, %v1954
        %v1956 = vpop.f32.mrb[0].mxu0
        %1957 = vmatprep.mubr.bf16.mxu0 %v1127
        %1958 = vmatmul.mubr.bf16.gmra.mrb[0].mxu0 %v1126
        %v1959 = vpop.f32.mrb[0].mxu0
        %v1960 = vadd.f32 %v1799, %v1959
        %v1961 = vpop.f32.mrb[0].mxu0
        %v1962 = vpop.f32.mrb[0].mxu0
        %v1963 = vadd.f32 %v1802, %v1962
        %v1964 = vpop.f32.mrb[0].mxu0
        %1965 = vmatprep.mubr.bf16.mxu0 %v1135
        %1966 = vmatmul.mubr.bf16.gmra.mrb[0].mxu0 %v1134
        %v1967 = vpop.f32.mrb[0].mxu0
        %v1968 = vadd.f32 %v1807, %v1967
        %v1969 = vpop.f32.mrb[0].mxu0
        %v1970 = vpop.f32.mrb[0].mxu0
        %v1971 = vadd.f32 %v1810, %v1970
        %v1972 = vpop.f32.mrb[0].mxu0
        %1973 = vmatprep.mubr.bf16.mxu0 %v1143
        %1974 = vmatmul.mubr.bf16.gmra.mrb[0].mxu0 %v1142
        %v1975 = vpop.f32.mrb[0].mxu0
        %v1976 = vadd.f32 %v1815, %v1975
        %v1977 = vpop.f32.mrb[0].mxu0
        %v1978 = vpop.f32.mrb[0].mxu0
        %v1979 = vadd.f32 %v1818, %v1978
        %v1980 = vpop.f32.mrb[0].mxu0
        %1981 = vdwg.mxu0
        %1982 = vmatprep.subr.bf16.mxu0 0
        %1983 = vmatpush1.bf16.msra.mxu0 %v1564
        %1984 = vmatprep.subr.bf16.mxu0 0
        %1985 = vmatpush1.bf16.msra.mxu0 %v1565
        %1986 = vmatprep.subr.bf16.mxu0 0
        %1987 = vmatpush1.bf16.msra.mxu0 %v1566
        %1988 = vmatprep.subr.bf16.mxu0 0
        %1989 = vmatpush1.bf16.msra.mxu0 %v1567
        %1990 = vmatprep.subr.bf16.mxu0 0
        %1991 = vmatpush1.bf16.msra.mxu0 %v1568
        %1992 = vmatprep.subr.bf16.mxu0 0
        %1993 = vmatpush1.bf16.msra.mxu0 %v1569
        %1994 = vmatprep.subr.bf16.mxu0 0
        %1995 = vmatpush1.bf16.msra.mxu0 %v1570
        %1996 = vmatprep.subr.bf16.mxu0 0
        %1997 = vmatpush1.bf16.msra.mxu0 %v1571
        %1998 = vmatprep.subr.bf16.mxu0 0
        %1999 = vmatpush1.bf16.msra.mxu0 %v1572
        %2000 = vmatprep.subr.bf16.mxu0 0
        %2001 = vmatpush1.bf16.msra.mxu0 %v1573
        %2002 = vmatprep.subr.bf16.mxu0 0
        %2003 = vmatpush1.bf16.msra.mxu0 %v1574
        %2004 = vmatprep.subr.bf16.mxu0 0
        %2005 = vmatpush1.bf16.msra.mxu0 %v1575
        %2006 = vmatprep.subr.bf16.mxu0 0
        %2007 = vmatpush1.bf16.msra.mxu0 %v1576
        %2008 = vmatprep.subr.bf16.mxu0 0
        %2009 = vmatpush1.bf16.msra.mxu0 %v1577
        %2010 = vmatprep.subr.bf16.mxu0 0
        %2011 = vmatpush1.bf16.msra.mxu0 %v1578
        %2012 = vmatprep.subr.bf16.mxu0 0
        %2013 = vmatpush1.bf16.msra.mxu0 %v1579
        %2014 = vmatprep.mubr.bf16.mxu0 %v1025
        %2015 = vmatmul.mubr.bf16.gmra.mrb[0].mxu0 %v1024
        %v2016 = vpop.f32.mrb[0].mxu0
        %v2017 = vadd.f32 %v1856, %v2016
        %v2018 = vpop.f32.mrb[0].mxu0
        %v2019 = vpop.f32.mrb[0].mxu0
        %v2020 = vadd.f32 %v1859, %v2019
        %v2021 = vpop.f32.mrb[0].mxu0
        %2022 = vmatprep.mubr.bf16.mxu0 %v1033
        %2023 = vmatmul.mubr.bf16.gmra.mrb[0].mxu0 %v1032
        %v2024 = vpop.f32.mrb[0].mxu0
        %v2025 = vadd.f32 %v1864, %v2024
        %v2026 = vpop.f32.mrb[0].mxu0
        %v2027 = vpop.f32.mrb[0].mxu0
        %v2028 = vadd.f32 %v1867, %v2027
        %v2029 = vpop.f32.mrb[0].mxu0
        %2030 = vmatprep.mubr.bf16.mxu0 %v1041
        %2031 = vmatmul.mubr.bf16.gmra.mrb[0].mxu0 %v1040
        %v2032 = vpop.f32.mrb[0].mxu0
        %v2033 = vadd.f32 %v1872, %v2032
        %v2034 = vpop.f32.mrb[0].mxu0
        %v2035 = vpop.f32.mrb[0].mxu0
        %v2036 = vadd.f32 %v1875, %v2035
        %v2037 = vpop.f32.mrb[0].mxu0
        %2038 = vmatprep.mubr.bf16.mxu0 %v1049
        %2039 = vmatmul.mubr.bf16.gmra.mrb[0].mxu0 %v1048
        %v2040 = vpop.f32.mrb[0].mxu0
        %v2041 = vadd.f32 %v1880, %v2040
        %v2042 = vpop.f32.mrb[0].mxu0
        %v2043 = vpop.f32.mrb[0].mxu0
        %v2044 = vadd.f32 %v1883, %v2043
        %v2045 = vpop.f32.mrb[0].mxu0
        %2046 = vmatprep.mubr.bf16.mxu0 %v1057
        %2047 = vmatmul.mubr.bf16.gmra.mrb[0].mxu0 %v1056
        %v2048 = vpop.f32.mrb[0].mxu0
        %v2049 = vadd.f32 %v1888, %v2048
        %v2050 = vpop.f32.mrb[0].mxu0
        %v2051 = vpop.f32.mrb[0].mxu0
        %v2052 = vadd.f32 %v1891, %v2051
        %v2053 = vpop.f32.mrb[0].mxu0
        %2054 = vmatprep.mubr.bf16.mxu0 %v1065
        %2055 = vmatmul.mubr.bf16.gmra.mrb[0].mxu0 %v1064
        %v2056 = vpop.f32.mrb[0].mxu0
        %v2057 = vadd.f32 %v1896, %v2056
        %v2058 = vpop.f32.mrb[0].mxu0
        %v2059 = vpop.f32.mrb[0].mxu0
        %v2060 = vadd.f32 %v1899, %v2059
        %v2061 = vpop.f32.mrb[0].mxu0
        %2062 = vmatprep.mubr.bf16.mxu0 %v1073
        %2063 = vmatmul.mubr.bf16.gmra.mrb[0].mxu0 %v1072
        %v2064 = vpop.f32.mrb[0].mxu0
        %v2065 = vadd.f32 %v1904, %v2064
        %v2066 = vpop.f32.mrb[0].mxu0
        %v2067 = vpop.f32.mrb[0].mxu0
        %v2068 = vadd.f32 %v1907, %v2067
        %v2069 = vpop.f32.mrb[0].mxu0
        %2070 = vmatprep.mubr.bf16.mxu0 %v1081
        %2071 = vmatmul.mubr.bf16.gmra.mrb[0].mxu0 %v1080
        %v2072 = vpop.f32.mrb[0].mxu0
        %v2073 = vadd.f32 %v1912, %v2072
        %v2074 = vpop.f32.mrb[0].mxu0
        %v2075 = vpop.f32.mrb[0].mxu0
        %v2076 = vadd.f32 %v1915, %v2075
        %v2077 = vpop.f32.mrb[0].mxu0
        %2078 = vmatprep.mubr.bf16.mxu0 %v1089
        %2079 = vmatmul.mubr.bf16.gmra.mrb[0].mxu0 %v1088
        %v2080 = vpop.f32.mrb[0].mxu0
        %v2081 = vadd.f32 %v1920, %v2080
        %v2082 = vpop.f32.mrb[0].mxu0
        %v2083 = vpop.f32.mrb[0].mxu0
        %v2084 = vadd.f32 %v1923, %v2083
        %v2085 = vpop.f32.mrb[0].mxu0
        %2086 = vmatprep.mubr.bf16.mxu0 %v1097
        %2087 = vmatmul.mubr.bf16.gmra.mrb[0].mxu0 %v1096
        %v2088 = vpop.f32.mrb[0].mxu0
        %v2089 = vadd.f32 %v1928, %v2088
        %v2090 = vpop.f32.mrb[0].mxu0
        %v2091 = vpop.f32.mrb[0].mxu0
        %v2092 = vadd.f32 %v1931, %v2091
        %v2093 = vpop.f32.mrb[0].mxu0
        %2094 = vmatprep.mubr.bf16.mxu0 %v1105
        %2095 = vmatmul.mubr.bf16.gmra.mrb[0].mxu0 %v1104
        %v2096 = vpop.f32.mrb[0].mxu0
        %v2097 = vadd.f32 %v1936, %v2096
        %v2098 = vpop.f32.mrb[0].mxu0
        %v2099 = vpop.f32.mrb[0].mxu0
        %v2100 = vadd.f32 %v1939, %v2099
        %v2101 = vpop.f32.mrb[0].mxu0
        %2102 = vmatprep.mubr.bf16.mxu0 %v1113
        %2103 = vmatmul.mubr.bf16.gmra.mrb[0].mxu0 %v1112
        %v2104 = vpop.f32.mrb[0].mxu0
        %v2105 = vadd.f32 %v1944, %v2104
        %v2106 = vpop.f32.mrb[0].mxu0
        %v2107 = vpop.f32.mrb[0].mxu0
        %v2108 = vadd.f32 %v1947, %v2107
        %v2109 = vpop.f32.mrb[0].mxu0
        %2110 = vmatprep.mubr.bf16.mxu0 %v1121
        %2111 = vmatmul.mubr.bf16.gmra.mrb[0].mxu0 %v1120
        %v2112 = vpop.f32.mrb[0].mxu0
        %v2113 = vadd.f32 %v1952, %v2112
        %v2114 = vpop.f32.mrb[0].mxu0
        %v2115 = vpop.f32.mrb[0].mxu0
        %v2116 = vadd.f32 %v1955, %v2115
        %v2117 = vpop.f32.mrb[0].mxu0
        %2118 = vmatprep.mubr.bf16.mxu0 %v1129
        %2119 = vmatmul.mubr.bf16.gmra.mrb[0].mxu0 %v1128
        %v2120 = vpop.f32.mrb[0].mxu0
        %v2121 = vadd.f32 %v1960, %v2120
        %v2122 = vpop.f32.mrb[0].mxu0
        %v2123 = vpop.f32.mrb[0].mxu0
        %v2124 = vadd.f32 %v1963, %v2123
        %v2125 = vpop.f32.mrb[0].mxu0
        %2126 = vmatprep.mubr.bf16.mxu0 %v1137
        %2127 = vmatmul.mubr.bf16.gmra.mrb[0].mxu0 %v1136
        %v2128 = vpop.f32.mrb[0].mxu0
        %v2129 = vadd.f32 %v1968, %v2128
        %v2130 = vpop.f32.mrb[0].mxu0
        %v2131 = vpop.f32.mrb[0].mxu0
        %v2132 = vadd.f32 %v1971, %v2131
        %v2133 = vpop.f32.mrb[0].mxu0
        %2134 = vmatprep.mubr.bf16.mxu0 %v1145
        %2135 = vmatmul.mubr.bf16.gmra.mrb[0].mxu0 %v1144
        %v2136 = vpop.f32.mrb[0].mxu0
        %v2137 = vadd.f32 %v1976, %v2136
        %v2138 = vpop.f32.mrb[0].mxu0
        %v2139 = vpop.f32.mrb[0].mxu0
        %v2140 = vadd.f32 %v1979, %v2139
        %v2141 = vpop.f32.mrb[0].mxu0
        %2142 = vdwg.mxu0
        %2143 = vmatprep.subr.bf16.mxu0 0
        %2144 = vmatpush1.bf16.msra.mxu0 %v1580
        %2145 = vmatprep.subr.bf16.mxu0 0
        %2146 = vmatpush1.bf16.msra.mxu0 %v1581
        %2147 = vmatprep.subr.bf16.mxu0 0
        %2148 = vmatpush1.bf16.msra.mxu0 %v1582
        %2149 = vmatprep.subr.bf16.mxu0 0
        %2150 = vmatpush1.bf16.msra.mxu0 %v1583
        %2151 = vmatprep.subr.bf16.mxu0 0
        %2152 = vmatpush1.bf16.msra.mxu0 %v1584
        %2153 = vmatprep.subr.bf16.mxu0 0
        %2154 = vmatpush1.bf16.msra.mxu0 %v1585
        %2155 = vmatprep.subr.bf16.mxu0 0
        %2156 = vmatpush1.bf16.msra.mxu0 %v1586
        %2157 = vmatprep.subr.bf16.mxu0 0
        %2158 = vmatpush1.bf16.msra.mxu0 %v1587
        %2159 = vmatprep.subr.bf16.mxu0 0
        %2160 = vmatpush1.bf16.msra.mxu0 %v1588
        %2161 = vmatprep.subr.bf16.mxu0 0
        %2162 = vmatpush1.bf16.msra.mxu0 %v1589
        %2163 = vmatprep.subr.bf16.mxu0 0
        %2164 = vmatpush1.bf16.msra.mxu0 %v1590
        %2165 = vmatprep.subr.bf16.mxu0 0
        %2166 = vmatpush1.bf16.msra.mxu0 %v1591
        %2167 = vmatprep.subr.bf16.mxu0 0
        %2168 = vmatpush1.bf16.msra.mxu0 %v1592
        %2169 = vmatprep.subr.bf16.mxu0 0
        %2170 = vmatpush1.bf16.msra.mxu0 %v1593
        %2171 = vmatprep.subr.bf16.mxu0 0
        %2172 = vmatpush1.bf16.msra.mxu0 %v1594
        %2173 = vmatprep.subr.bf16.mxu0 0
        %2174 = vmatpush1.bf16.msra.mxu0 %v1595
        %2175 = vmatprep.mubr.bf16.mxu0 %v1027
        %2176 = vmatmul.mubr.bf16.gmra.mrb[0].mxu0 %v1026
        %v2177 = vpop.f32.mrb[0].mxu0
        %v2178 = vadd.f32 %v2017, %v2177
        %v2179 = vpop.f32.mrb[0].mxu0
        %v2180 = vpop.f32.mrb[0].mxu0
        %v2181 = vadd.f32 %v2020, %v2180
        %v2182 = vpop.f32.mrb[0].mxu0
        %2183 = vmatprep.mubr.bf16.mxu0 %v1035
        %2184 = vmatmul.mubr.bf16.gmra.mrb[0].mxu0 %v1034
        %v2185 = vpop.f32.mrb[0].mxu0
        %v2186 = vadd.f32 %v2025, %v2185
        %v2187 = vpop.f32.mrb[0].mxu0
        %v2188 = vpop.f32.mrb[0].mxu0
        %v2189 = vadd.f32 %v2028, %v2188
        %v2190 = vpop.f32.mrb[0].mxu0
        %2191 = vmatprep.mubr.bf16.mxu0 %v1043
        %2192 = vmatmul.mubr.bf16.gmra.mrb[0].mxu0 %v1042
        %v2193 = vpop.f32.mrb[0].mxu0
        %v2194 = vadd.f32 %v2033, %v2193
        %v2195 = vpop.f32.mrb[0].mxu0
        %v2196 = vpop.f32.mrb[0].mxu0
        %v2197 = vadd.f32 %v2036, %v2196
        %v2198 = vpop.f32.mrb[0].mxu0
        %2199 = vmatprep.mubr.bf16.mxu0 %v1051
        %2200 = vmatmul.mubr.bf16.gmra.mrb[0].mxu0 %v1050
        %v2201 = vpop.f32.mrb[0].mxu0
        %v2202 = vadd.f32 %v2041, %v2201
        %v2203 = vpop.f32.mrb[0].mxu0
        %v2204 = vpop.f32.mrb[0].mxu0
        %v2205 = vadd.f32 %v2044, %v2204
        %v2206 = vpop.f32.mrb[0].mxu0
        %2207 = vmatprep.mubr.bf16.mxu0 %v1059
        %2208 = vmatmul.mubr.bf16.gmra.mrb[0].mxu0 %v1058
        %v2209 = vpop.f32.mrb[0].mxu0
        %v2210 = vadd.f32 %v2049, %v2209
        %v2211 = vpop.f32.mrb[0].mxu0
        %v2212 = vpop.f32.mrb[0].mxu0
        %v2213 = vadd.f32 %v2052, %v2212
        %v2214 = vpop.f32.mrb[0].mxu0
        %2215 = vmatprep.mubr.bf16.mxu0 %v1067
        %2216 = vmatmul.mubr.bf16.gmra.mrb[0].mxu0 %v1066
        %v2217 = vpop.f32.mrb[0].mxu0
        %v2218 = vadd.f32 %v2057, %v2217
        %v2219 = vpop.f32.mrb[0].mxu0
        %v2220 = vpop.f32.mrb[0].mxu0
        %v2221 = vadd.f32 %v2060, %v2220
        %v2222 = vpop.f32.mrb[0].mxu0
        %2223 = vmatprep.mubr.bf16.mxu0 %v1075
        %2224 = vmatmul.mubr.bf16.gmra.mrb[0].mxu0 %v1074
        %v2225 = vpop.f32.mrb[0].mxu0
        %v2226 = vadd.f32 %v2065, %v2225
        %v2227 = vpop.f32.mrb[0].mxu0
        %v2228 = vpop.f32.mrb[0].mxu0
        %v2229 = vadd.f32 %v2068, %v2228
        %v2230 = vpop.f32.mrb[0].mxu0
        %2231 = vmatprep.mubr.bf16.mxu0 %v1083
        %2232 = vmatmul.mubr.bf16.gmra.mrb[0].mxu0 %v1082
        %v2233 = vpop.f32.mrb[0].mxu0
        %v2234 = vadd.f32 %v2073, %v2233
        %v2235 = vpop.f32.mrb[0].mxu0
        %v2236 = vpop.f32.mrb[0].mxu0
        %v2237 = vadd.f32 %v2076, %v2236
        %v2238 = vpop.f32.mrb[0].mxu0
        %2239 = vmatprep.mubr.bf16.mxu0 %v1091
        %2240 = vmatmul.mubr.bf16.gmra.mrb[0].mxu0 %v1090
        %v2241 = vpop.f32.mrb[0].mxu0
        %v2242 = vadd.f32 %v2081, %v2241
        %v2243 = vpop.f32.mrb[0].mxu0
        %v2244 = vpop.f32.mrb[0].mxu0
        %v2245 = vadd.f32 %v2084, %v2244
        %v2246 = vpop.f32.mrb[0].mxu0
        %2247 = vmatprep.mubr.bf16.mxu0 %v1099
        %2248 = vmatmul.mubr.bf16.gmra.mrb[0].mxu0 %v1098
        %v2249 = vpop.f32.mrb[0].mxu0
        %v2250 = vadd.f32 %v2089, %v2249
        %v2251 = vpop.f32.mrb[0].mxu0
        %v2252 = vpop.f32.mrb[0].mxu0
        %v2253 = vadd.f32 %v2092, %v2252
        %v2254 = vpop.f32.mrb[0].mxu0
        %2255 = vmatprep.mubr.bf16.mxu0 %v1107
        %2256 = vmatmul.mubr.bf16.gmra.mrb[0].mxu0 %v1106
        %v2257 = vpop.f32.mrb[0].mxu0
        %v2258 = vadd.f32 %v2097, %v2257
        %v2259 = vpop.f32.mrb[0].mxu0
        %v2260 = vpop.f32.mrb[0].mxu0
        %v2261 = vadd.f32 %v2100, %v2260
        %v2262 = vpop.f32.mrb[0].mxu0
        %2263 = vmatprep.mubr.bf16.mxu0 %v1115
        %2264 = vmatmul.mubr.bf16.gmra.mrb[0].mxu0 %v1114
        %v2265 = vpop.f32.mrb[0].mxu0
        %v2266 = vadd.f32 %v2105, %v2265
        %v2267 = vpop.f32.mrb[0].mxu0
        %v2268 = vpop.f32.mrb[0].mxu0
        %v2269 = vadd.f32 %v2108, %v2268
        %v2270 = vpop.f32.mrb[0].mxu0
        %2271 = vmatprep.mubr.bf16.mxu0 %v1123
        %2272 = vmatmul.mubr.bf16.gmra.mrb[0].mxu0 %v1122
        %v2273 = vpop.f32.mrb[0].mxu0
        %v2274 = vadd.f32 %v2113, %v2273
        %v2275 = vpop.f32.mrb[0].mxu0
        %v2276 = vpop.f32.mrb[0].mxu0
        %v2277 = vadd.f32 %v2116, %v2276
        %v2278 = vpop.f32.mrb[0].mxu0
        %2279 = vmatprep.mubr.bf16.mxu0 %v1131
        %2280 = vmatmul.mubr.bf16.gmra.mrb[0].mxu0 %v1130
        %v2281 = vpop.f32.mrb[0].mxu0
        %v2282 = vadd.f32 %v2121, %v2281
        %v2283 = vpop.f32.mrb[0].mxu0
        %v2284 = vpop.f32.mrb[0].mxu0
        %v2285 = vadd.f32 %v2124, %v2284
        %v2286 = vpop.f32.mrb[0].mxu0
        %2287 = vmatprep.mubr.bf16.mxu0 %v1139
        %2288 = vmatmul.mubr.bf16.gmra.mrb[0].mxu0 %v1138
        %v2289 = vpop.f32.mrb[0].mxu0
        %v2290 = vadd.f32 %v2129, %v2289
        %v2291 = vpop.f32.mrb[0].mxu0
        %v2292 = vpop.f32.mrb[0].mxu0
        %v2293 = vadd.f32 %v2132, %v2292
        %v2294 = vpop.f32.mrb[0].mxu0
        %2295 = vmatprep.mubr.bf16.mxu0 %v1147
        %2296 = vmatmul.mubr.bf16.gmra.mrb[0].mxu0 %v1146
        %v2297 = vpop.f32.mrb[0].mxu0
        %v2298 = vadd.f32 %v2137, %v2297
        %v2299 = vpop.f32.mrb[0].mxu0
        %v2300 = vpop.f32.mrb[0].mxu0
        %v2301 = vadd.f32 %v2140, %v2300
        %v2302 = vpop.f32.mrb[0].mxu0
        %2303 = vdwg.mxu0
        %v2304 = vadd.f32 %v348, %v2178
        %v2305 = vadd.f32 %v349, %v2181
        %v2306 = vadd.f32 %v350, %v2186
        %v2307 = vadd.f32 %v351, %v2189
        %v2308 = vadd.f32 %v352, %v2194
        %v2309 = vadd.f32 %v353, %v2197
        %v2310 = vadd.f32 %v354, %v2202
        %v2311 = vadd.f32 %v355, %v2205
        %v2312 = vadd.f32 %v356, %v2210
        %v2313 = vadd.f32 %v357, %v2213
        %v2314 = vadd.f32 %v358, %v2218
        %v2315 = vadd.f32 %v359, %v2221
        %v2316 = vadd.f32 %v360, %v2226
        %v2317 = vadd.f32 %v361, %v2229
        %v2318 = vadd.f32 %v362, %v2234
        %v2319 = vadd.f32 %v363, %v2237
        %v2320 = vadd.f32 %v364, %v2242
        %v2321 = vadd.f32 %v365, %v2245
        %v2322 = vadd.f32 %v366, %v2250
        %v2323 = vadd.f32 %v367, %v2253
        %v2324 = vadd.f32 %v368, %v2258
        %v2325 = vadd.f32 %v369, %v2261
        %v2326 = vadd.f32 %v370, %v2266
        %v2327 = vadd.f32 %v371, %v2269
        %v2328 = vadd.f32 %v372, %v2274
        %v2329 = vadd.f32 %v373, %v2277
        %v2330 = vadd.f32 %v374, %v2282
        %v2331 = vadd.f32 %v375, %v2285
        %v2332 = vadd.f32 %v376, %v2290
        %v2333 = vadd.f32 %v377, %v2293
        %v2334 = vadd.f32 %v378, %v2298
        %v2335 = vadd.f32 %v379, %v2301
        %2336 = vst [vmem:[#allocation2] sm:$0xff] %v2304
        %2337 = vst [vmem:[#allocation2 + $0x8] sm:$0xff] %v2305
        %2338 = vst [vmem:[#allocation2 + $0x10] sm:$0xff] %v2306
        %2339 = vst [vmem:[#allocation2 + $0x18] sm:$0xff] %v2307
        %2340 = vst [vmem:[#allocation2 + $0x20] sm:$0xff] %v2308
        %2341 = vst [vmem:[#allocation2 + $0x28] sm:$0xff] %v2309
        %2342 = vst [vmem:[#allocation2 + $0x30] sm:$0xff] %v2310
        %2343 = vst [vmem:[#allocation2 + $0x38] sm:$0xff] %v2311
        %2344 = vst [vmem:[#allocation2 + $0x40] sm:$0xff] %v2312
        %2345 = vst [vmem:[#allocation2 + $0x48] sm:$0xff] %v2313
        %2346 = vst [vmem:[#allocation2 + $0x50] sm:$0xff] %v2314
        %2347 = vst [vmem:[#allocation2 + $0x58] sm:$0xff] %v2315
        %2348 = vst [vmem:[#allocation2 + $0x60] sm:$0xff] %v2316
        %2349 = vst [vmem:[#allocation2 + $0x68] sm:$0xff] %v2317
        %2350 = vst [vmem:[#allocation2 + $0x70] sm:$0xff] %v2318
        %2351 = vst [vmem:[#allocation2 + $0x78] sm:$0xff] %v2319
        %2352 = vst [vmem:[#allocation2 + $0x80] sm:$0xff] %v2320
        %2353 = vst [vmem:[#allocation2 + $0x88] sm:$0xff] %v2321
        %2354 = vst [vmem:[#allocation2 + $0x90] sm:$0xff] %v2322
        %2355 = vst [vmem:[#allocation2 + $0x98] sm:$0xff] %v2323
        %2356 = vst [vmem:[#allocation2 + $0xa0] sm:$0xff] %v2324
        %2357 = vst [vmem:[#allocation2 + $0xa8] sm:$0xff] %v2325
        %2358 = vst [vmem:[#allocation2 + $0xb0] sm:$0xff] %v2326
        %2359 = vst [vmem:[#allocation2 + $0xb8] sm:$0xff] %v2327
        %2360 = vst [vmem:[#allocation2 + $0xc0] sm:$0xff] %v2328
        %2361 = vst [vmem:[#allocation2 + $0xc8] sm:$0xff] %v2329
        %2362 = vst [vmem:[#allocation2 + $0xd0] sm:$0xff] %v2330
        %2363 = vst [vmem:[#allocation2 + $0xd8] sm:$0xff] %v2331
        %2364 = vst [vmem:[#allocation2 + $0xe0] sm:$0xff] %v2332
        %2365 = vst [vmem:[#allocation2 + $0xe8] sm:$0xff] %v2333
        %2366 = vst [vmem:[#allocation2 + $0xf0] sm:$0xff] %v2334
        %2367 = vst [vmem:[#allocation2 + $0xf8] sm:$0xff] %v2335
        // Predicated region
        $region57: #{tpu_custom_call.1} parent=35 // pred_check
          %p2368 = pneg %p312
        $region58: #{tpu_custom_call.1} parent=35 // pred_check_branch
          %2370 = sbr.rel (%p2368) target = $region60
        $region59: #{tpu_custom_call.1} parent=35 // pred_region
          %v2371 = vld [vmem:[#allocation2] sm:$0xff]
          %v2372 = vld [vmem:[#allocation2 + $0x8] sm:$0xff]
          %v2373 = vld [vmem:[#allocation2 + $0x10] sm:$0xff]
          %v2374 = vld [vmem:[#allocation2 + $0x18] sm:$0xff]
          %v2375 = vld [vmem:[#allocation2 + $0x20] sm:$0xff]
          %v2376 = vld [vmem:[#allocation2 + $0x28] sm:$0xff]
          %v2377 = vld [vmem:[#allocation2 + $0x30] sm:$0xff]
          %v2378 = vld [vmem:[#allocation2 + $0x38] sm:$0xff]
          %v2379 = vld [vmem:[#allocation2 + $0x40] sm:$0xff]
          %v2380 = vld [vmem:[#allocation2 + $0x48] sm:$0xff]
          %v2381 = vld [vmem:[#allocation2 + $0x50] sm:$0xff]
          %v2382 = vld [vmem:[#allocation2 + $0x58] sm:$0xff]
          %v2383 = vld [vmem:[#allocation2 + $0x60] sm:$0xff]
          %v2384 = vld [vmem:[#allocation2 + $0x68] sm:$0xff]
          %v2385 = vld [vmem:[#allocation2 + $0x70] sm:$0xff]
          %v2386 = vld [vmem:[#allocation2 + $0x78] sm:$0xff]
          %v2387 = vld [vmem:[#allocation2 + $0x80] sm:$0xff]
          %v2388 = vld [vmem:[#allocation2 + $0x88] sm:$0xff]
          %v2389 = vld [vmem:[#allocation2 + $0x90] sm:$0xff]
          %v2390 = vld [vmem:[#allocation2 + $0x98] sm:$0xff]
          %v2391 = vld [vmem:[#allocation2 + $0xa0] sm:$0xff]
          %v2392 = vld [vmem:[#allocation2 + $0xa8] sm:$0xff]
          %v2393 = vld [vmem:[#allocation2 + $0xb0] sm:$0xff]
          %v2394 = vld [vmem:[#allocation2 + $0xb8] sm:$0xff]
          %v2395 = vld [vmem:[#allocation2 + $0xc0] sm:$0xff]
          %v2396 = vld [vmem:[#allocation2 + $0xc8] sm:$0xff]
          %v2397 = vld [vmem:[#allocation2 + $0xd0] sm:$0xff]
          %v2398 = vld [vmem:[#allocation2 + $0xd8] sm:$0xff]
          %v2399 = vld [vmem:[#allocation2 + $0xe0] sm:$0xff]
          %v2400 = vld [vmem:[#allocation2 + $0xe8] sm:$0xff]
          %v2401 = vld [vmem:[#allocation2 + $0xf0] sm:$0xff]
          %v2402 = vld [vmem:[#allocation2 + $0xf8] sm:$0xff]
          %v2403 = vld [vmem:[#allocation8] sm:$0x1]
          %v2405 = vlaneseq
          %v2406 = vshrl.u32 %v2405, 7
          %v2407 = vsub.s32 0, %v2406
          %v2408 = vrot.slane %v2403, %v2407
          %v2410 = vmul.f32 %v2371, %v2408
          %v2411 = vmul.f32 %v2372, %v2408
          %v2412 = vmul.f32 %v2373, %v2408
          %v2413 = vmul.f32 %v2374, %v2408
          %v2414 = vmul.f32 %v2375, %v2408
          %v2415 = vmul.f32 %v2376, %v2408
          %v2416 = vmul.f32 %v2377, %v2408
          %v2417 = vmul.f32 %v2378, %v2408
          %v2418 = vmul.f32 %v2379, %v2408
          %v2419 = vmul.f32 %v2380, %v2408
          %v2420 = vmul.f32 %v2381, %v2408
          %v2421 = vmul.f32 %v2382, %v2408
          %v2422 = vmul.f32 %v2383, %v2408
          %v2423 = vmul.f32 %v2384, %v2408
          %v2424 = vmul.f32 %v2385, %v2408
          %v2425 = vmul.f32 %v2386, %v2408
          %v2426 = vmul.f32 %v2387, %v2408
          %v2427 = vmul.f32 %v2388, %v2408
          %v2428 = vmul.f32 %v2389, %v2408
          %v2429 = vmul.f32 %v2390, %v2408
          %v2430 = vmul.f32 %v2391, %v2408
          %v2431 = vmul.f32 %v2392, %v2408
          %v2432 = vmul.f32 %v2393, %v2408
          %v2433 = vmul.f32 %v2394, %v2408
          %v2434 = vmul.f32 %v2395, %v2408
          %v2435 = vmul.f32 %v2396, %v2408
          %v2436 = vmul.f32 %v2397, %v2408
          %v2437 = vmul.f32 %v2398, %v2408
          %v2438 = vmul.f32 %v2399, %v2408
          %v2439 = vmul.f32 %v2400, %v2408
          %v2440 = vmul.f32 %v2401, %v2408
          %v2441 = vmul.f32 %v2402, %v2408
          %v2442 = vld [vmem:[#allocation9] sm:$0x1]
          %v2444 = vlaneseq
          %v2445 = vshrl.u32 %v2444, 7
          %v2446 = vsub.s32 0, %v2445
          %v2447 = vrot.slane %v2442, %v2446
          %v2449 = vadd.f32 %v2410, %v2447
          %v2450 = vadd.f32 %v2411, %v2447
          %v2451 = vadd.f32 %v2412, %v2447
          %v2452 = vadd.f32 %v2413, %v2447
          %v2453 = vadd.f32 %v2414, %v2447
          %v2454 = vadd.f32 %v2415, %v2447
          %v2455 = vadd.f32 %v2416, %v2447
          %v2456 = vadd.f32 %v2417, %v2447
          %v2457 = vadd.f32 %v2418, %v2447
          %v2458 = vadd.f32 %v2419, %v2447
          %v2459 = vadd.f32 %v2420, %v2447
          %v2460 = vadd.f32 %v2421, %v2447
          %v2461 = vadd.f32 %v2422, %v2447
          %v2462 = vadd.f32 %v2423, %v2447
          %v2463 = vadd.f32 %v2424, %v2447
          %v2464 = vadd.f32 %v2425, %v2447
          %v2465 = vadd.f32 %v2426, %v2447
          %v2466 = vadd.f32 %v2427, %v2447
          %v2467 = vadd.f32 %v2428, %v2447
          %v2468 = vadd.f32 %v2429, %v2447
          %v2469 = vadd.f32 %v2430, %v2447
          %v2470 = vadd.f32 %v2431, %v2447
          %v2471 = vadd.f32 %v2432, %v2447
          %v2472 = vadd.f32 %v2433, %v2447
          %v2473 = vadd.f32 %v2434, %v2447
          %v2474 = vadd.f32 %v2435, %v2447
          %v2475 = vadd.f32 %v2436, %v2447
          %v2476 = vadd.f32 %v2437, %v2447
          %v2477 = vadd.f32 %v2438, %v2447
          %v2478 = vadd.f32 %v2439, %v2447
          %v2479 = vadd.f32 %v2440, %v2447
          %v2480 = vadd.f32 %v2441, %v2447
          %v2481 = vmax.f32 %v2449, 0.0
          %v2482 = vmax.f32 %v2450, 0.0
          %v2483 = vmax.f32 %v2451, 0.0
          %v2484 = vmax.f32 %v2452, 0.0
          %v2485 = vmax.f32 %v2453, 0.0
          %v2486 = vmax.f32 %v2454, 0.0
          %v2487 = vmax.f32 %v2455, 0.0
          %v2488 = vmax.f32 %v2456, 0.0
          %v2489 = vmax.f32 %v2457, 0.0
          %v2490 = vmax.f32 %v2458, 0.0
          %v2491 = vmax.f32 %v2459, 0.0
          %v2492 = vmax.f32 %v2460, 0.0
          %v2493 = vmax.f32 %v2461, 0.0
          %v2494 = vmax.f32 %v2462, 0.0
          %v2495 = vmax.f32 %v2463, 0.0
          %v2496 = vmax.f32 %v2464, 0.0
          %v2497 = vmax.f32 %v2465, 0.0
          %v2498 = vmax.f32 %v2466, 0.0
          %v2499 = vmax.f32 %v2467, 0.0
          %v2500 = vmax.f32 %v2468, 0.0
          %v2501 = vmax.f32 %v2469, 0.0
          %v2502 = vmax.f32 %v2470, 0.0
          %v2503 = vmax.f32 %v2471, 0.0
          %v2504 = vmax.f32 %v2472, 0.0
          %v2505 = vmax.f32 %v2473, 0.0
          %v2506 = vmax.f32 %v2474, 0.0
          %v2507 = vmax.f32 %v2475, 0.0
          %v2508 = vmax.f32 %v2476, 0.0
          %v2509 = vmax.f32 %v2477, 0.0
          %v2510 = vmax.f32 %v2478, 0.0
          %v2511 = vmax.f32 %v2479, 0.0
          %v2512 = vmax.f32 %v2480, 0.0
          %v2513 = vpack.c.bf16 %v2482, %v2481
          %v2514 = vpack.c.bf16 %v2484, %v2483
          %v2515 = vpack.c.bf16 %v2486, %v2485
          %v2516 = vpack.c.bf16 %v2488, %v2487
          %v2517 = vpack.c.bf16 %v2490, %v2489
          %v2518 = vpack.c.bf16 %v2492, %v2491
          %v2519 = vpack.c.bf16 %v2494, %v2493
          %v2520 = vpack.c.bf16 %v2496, %v2495
          %v2521 = vpack.c.bf16 %v2498, %v2497
          %v2522 = vpack.c.bf16 %v2500, %v2499
          %v2523 = vpack.c.bf16 %v2502, %v2501
          %v2524 = vpack.c.bf16 %v2504, %v2503
          %v2525 = vpack.c.bf16 %v2506, %v2505
          %v2526 = vpack.c.bf16 %v2508, %v2507
          %v2527 = vpack.c.bf16 %v2510, %v2509
          %v2528 = vpack.c.bf16 %v2512, %v2511
          %v2545 = vunpack.c.l.b16 %v2513
          %v2546 = vunpack.c.h.b16 %v2513
          %v2547 = vunpack.c.l.b16 %v2514
          %v2548 = vunpack.c.h.b16 %v2514
          %v2549 = vunpack.c.l.b16 %v2515
          %v2550 = vunpack.c.h.b16 %v2515
          %v2551 = vunpack.c.l.b16 %v2516
          %v2552 = vunpack.c.h.b16 %v2516
          %v2553 = vunpack.c.l.b16 %v2517
          %v2554 = vunpack.c.h.b16 %v2517
          %v2555 = vunpack.c.l.b16 %v2518
          %v2556 = vunpack.c.h.b16 %v2518
          %v2557 = vunpack.c.l.b16 %v2519
          %v2558 = vunpack.c.h.b16 %v2519
          %v2559 = vunpack.c.l.b16 %v2520
          %v2560 = vunpack.c.h.b16 %v2520
          %v2561 = vunpack.c.l.b16 %v2521
          %v2562 = vunpack.c.h.b16 %v2521
          %v2563 = vunpack.c.l.b16 %v2522
          %v2564 = vunpack.c.h.b16 %v2522
          %v2565 = vunpack.c.l.b16 %v2523
          %v2566 = vunpack.c.h.b16 %v2523
          %v2567 = vunpack.c.l.b16 %v2524
          %v2568 = vunpack.c.h.b16 %v2524
          %v2569 = vunpack.c.l.b16 %v2525
          %v2570 = vunpack.c.h.b16 %v2525
          %v2571 = vunpack.c.l.b16 %v2526
          %v2572 = vunpack.c.h.b16 %v2526
          %v2573 = vunpack.c.l.b16 %v2527
          %v2574 = vunpack.c.h.b16 %v2527
          %v2575 = vunpack.c.l.b16 %v2528
          %v2576 = vunpack.c.h.b16 %v2528
          %v2577 = vpack.c.b16 %v2545, %v2545
          %v2578 = vpack.c.b16 %v2546, %v2546
          %v2579 = vpack.c.b16 %v2547, %v2547
          %v2580 = vpack.c.b16 %v2548, %v2548
          %v2581 = vpack.c.b16 %v2549, %v2549
          %v2582 = vpack.c.b16 %v2550, %v2550
          %v2583 = vpack.c.b16 %v2551, %v2551
          %v2584 = vpack.c.b16 %v2552, %v2552
          %v2585 = vpack.c.b16 %v2553, %v2553
          %v2586 = vpack.c.b16 %v2554, %v2554
          %v2587 = vpack.c.b16 %v2555, %v2555
          %v2588 = vpack.c.b16 %v2556, %v2556
          %v2589 = vpack.c.b16 %v2557, %v2557
          %v2590 = vpack.c.b16 %v2558, %v2558
          %v2591 = vpack.c.b16 %v2559, %v2559
          %v2592 = vpack.c.b16 %v2560, %v2560
          %v2593 = vpack.c.b16 %v2561, %v2561
          %v2594 = vpack.c.b16 %v2562, %v2562
          %v2595 = vpack.c.b16 %v2563, %v2563
          %v2596 = vpack.c.b16 %v2564, %v2564
          %v2597 = vpack.c.b16 %v2565, %v2565
          %v2598 = vpack.c.b16 %v2566, %v2566
          %v2599 = vpack.c.b16 %v2567, %v2567
          %v2600 = vpack.c.b16 %v2568, %v2568
          %v2601 = vpack.c.b16 %v2569, %v2569
          %v2602 = vpack.c.b16 %v2570, %v2570
          %v2603 = vpack.c.b16 %v2571, %v2571
          %v2604 = vpack.c.b16 %v2572, %v2572
          %v2605 = vpack.c.b16 %v2573, %v2573
          %v2606 = vpack.c.b16 %v2574, %v2574
          %v2607 = vpack.c.b16 %v2575, %v2575
          %v2608 = vpack.c.b16 %v2576, %v2576
          %2641 = vst [vmem:[%s306] sm:$0xf] %v2577
          %2642 = vst [vmem:[%s306 + $0x4] sm:$0xf] %v2578
          %2643 = vst [vmem:[%s306 + $0x8] sm:$0xf] %v2579
          %2644 = vst [vmem:[%s306 + $0xc] sm:$0xf] %v2580
          %2645 = vst [vmem:[%s306 + $0x10] sm:$0xf] %v2581
          %2646 = vst [vmem:[%s306 + $0x14] sm:$0xf] %v2582
          %2647 = vst [vmem:[%s306 + $0x18] sm:$0xf] %v2583
          %2648 = vst [vmem:[%s306 + $0x1c] sm:$0xf] %v2584
          %2649 = vst [vmem:[%s306 + $0x20] sm:$0xf] %v2585
          %2650 = vst [vmem:[%s306 + $0x24] sm:$0xf] %v2586
          %2651 = vst [vmem:[%s306 + $0x28] sm:$0xf] %v2587
          %2652 = vst [vmem:[%s306 + $0x2c] sm:$0xf] %v2588
          %2653 = vst [vmem:[%s306 + $0x30] sm:$0xf] %v2589
          %2654 = vst [vmem:[%s306 + $0x34] sm:$0xf] %v2590
          %2655 = vst [vmem:[%s306 + $0x38] sm:$0xf] %v2591
          %2656 = vst [vmem:[%s306 + $0x3c] sm:$0xf] %v2592
          %2657 = vst [vmem:[%s306 + $0x40] sm:$0xf] %v2593
          %2658 = vst [vmem:[%s306 + $0x44] sm:$0xf] %v2594
          %2659 = vst [vmem:[%s306 + $0x48] sm:$0xf] %v2595
          %2660 = vst [vmem:[%s306 + $0x4c] sm:$0xf] %v2596
          %2661 = vst [vmem:[%s306 + $0x50] sm:$0xf] %v2597
          %2662 = vst [vmem:[%s306 + $0x54] sm:$0xf] %v2598
          %2663 = vst [vmem:[%s306 + $0x58] sm:$0xf] %v2599
          %2664 = vst [vmem:[%s306 + $0x5c] sm:$0xf] %v2600
          %2665 = vst [vmem:[%s306 + $0x60] sm:$0xf] %v2601
          %2666 = vst [vmem:[%s306 + $0x64] sm:$0xf] %v2602
          %2667 = vst [vmem:[%s306 + $0x68] sm:$0xf] %v2603
          %2668 = vst [vmem:[%s306 + $0x6c] sm:$0xf] %v2604
          %2669 = vst [vmem:[%s306 + $0x70] sm:$0xf] %v2605
          %2670 = vst [vmem:[%s306 + $0x74] sm:$0xf] %v2606
          %2671 = vst [vmem:[%s306 + $0x78] sm:$0xf] %v2607
          %2672 = vst [vmem:[%s306 + $0x7c] sm:$0xf] %v2608
        $region60: #{tpu_custom_call.1} parent=35 // pred_fallthru
          _
        %s2673 = sand.u32 %s160, 1
        %s2674 = scalar_lea.sflag [#allocation5], %s2673
        %s2675 = sand.u32 %s160, 1
        %s2676 = smul.addr %s2675, 128
        %s2677 = scalar_lea.vmem [#allocation11], %s2676
        // Predicated region
        $region61: #{tpu_custom_call.1} parent=35 // pred_check
          %p2678 = pneg %p170
        $region62: #{tpu_custom_call.1} parent=35 // pred_check_branch
          %2680 = sbr.rel (%p2678) target = $region64
        $region63: #{tpu_custom_call.1} parent=35 // pred_region
          %s2681 = smul.u32 32, %s28
          %s2683 = ssub.s32 2048, 2048
          %2684 = vsyncadd %s2674, %s2683
          %s2685 = sadd.s32 %s29, %s2681
          %s2686 = smul.addr %s2685, 64
          %s2687 = scalar_lea.hbm %s4, %s2686
          %s2688 = sshll.u32 %s2677, 4
          %s2689 = int_to_ptr.vmem [resolvable:$true] %s2688
          %2694 = dma.vmem_to_hbm [thread:$0]  %s2689, 2048, %s2687, %s2674, 64, 64, 4
        $region64: #{tpu_custom_call.1} parent=35 // pred_fallthru
          _
      $region36: #{tpu_custom_call.1} parent=5 // pred_fallthru
        _
      %p2695 = scmp.le.s32.totalorder 2, %s18
      // Predicated region
      $region65: #{tpu_custom_call.1} parent=5 // pred_check
        %p2696 = pneg %p2695
      $region66: #{tpu_custom_call.1} parent=5 // pred_check_branch
        %2698 = sbr.rel (%p2696) target = $region68
      $region67: #{tpu_custom_call.1} parent=5 // pred_region
        %s2699 = ssub.s32 %s18, 2
        // Predicated region
        $region69: #{tpu_custom_call.1} parent=67 // pred_check
          %p2700 = pneg %p176
        $region70: #{tpu_custom_call.1} parent=67 // pred_check_branch
          %2702 = sbr.rel (%p2700) target = $region72
        $region71: #{tpu_custom_call.1} parent=67 // pred_region
          %s2703 = sand.u32 %s161, 1
          %s2704 = scalar_lea.sflag [#allocation5], %s2703
          %s2705 = sand.u32 %s161, 1
          %s2706 = smul.addr %s2705, 128
          %s2707 = scalar_lea.vmem [#allocation11], %s2706
          %2708 = dma.done %s2704, 2048
        $region72: #{tpu_custom_call.1} parent=67 // pred_fallthru
          _
      $region68: #{tpu_custom_call.1} parent=5 // pred_fallthru
        _
    $region6: #{tpu_custom_call.1} parent=1 // loop_footer
      %s22 = sadd.s32 1, %s18
    $region7: #{tpu_custom_call.1} parent=1 // loop_footer_branch
      %17 = sbr.rel target = $region3
    $region8: #{tpu_custom_call.1} parent=1 // loop_exit
      _
    %2709 = vsyncpa [#allocation4], 1
    %s2710 = scalar_lea.sflag [#allocation4], 1
    %2711 = vsyncpa %s2710, 1
    %2712 = vsyncpa [#allocation7], 1
    %2713 = vsyncpa [#allocation10], 1
    %2714 = vsyncpa [#allocation5], 1
    %s2715 = scalar_lea.sflag [#allocation5], 1
    %2716 = vsyncpa %s2715, 1

</llo_original>
